<compile_context>
chip_gen: v7x
topology: tpu7x:2x2x1
jax: 0.10.0
libtpu: 0.0.40
codegen_flags: <defaults>
</compile_context>

<pallas_src>
import functools

import jax
import jax.numpy as jnp
from jax.experimental import pallas as pl
from jax.experimental.pallas import tpu as pltpu

DROPOUT_P = 0.3
N_EMBED = 256


def _round_up(x, m):
    return ((x + m - 1) // m) * m


def _ffn_kernel(*refs, keep_threshold, inv_keep_prob, training):
    if training:
        x_ref, w1_ref, b1_ref, w2_ref, b2_ref, bits_ref, o_ref = refs
    else:
        x_ref, w1_ref, b1_ref, w2_ref, b2_ref, o_ref = refs

    # Linear 1 + ReLU: bf16 operands, f32 accumulation on the MXU.
    h = jnp.dot(x_ref[...], w1_ref[...], preferred_element_type=jnp.float32)
    h = jnp.maximum(h + b1_ref[...], 0.0)

    # Linear 2: re-quantize the hidden activation to bf16 for the MXU.
    y = jnp.dot(h.astype(jnp.bfloat16), w2_ref[...],
                preferred_element_type=jnp.float32)
    y = y + b2_ref[...]

    if training:
        # Inverted dropout: compare raw uint32 bits against a uint32 threshold
        # (same Bernoulli(keep_prob) distribution, no float conversion needed).
        keep = bits_ref[...] < jnp.uint32(keep_threshold)
        y = jnp.where(keep, y * inv_keep_prob, 0.0)

    o_ref[...] = y.astype(o_ref.dtype)


def feed_forward(x, w1, b1, w2, b2, *, dropout_key=None, training=True,
                 block_rows=512):
    """x: (..., n_embed) float32. Returns the same shape/dtype."""
    orig_shape = x.shape
    c = orig_shape[-1]
    hdim = w1.shape[1]
    x2 = x.reshape(-1, c)
    n = x2.shape[0]

    # Fixed row tile (multiple of 8 sublanes; 512 feeds the 256-wide MXU well),
    # capped for tiny inputs so we don't over-pad. Pad N to a tile multiple.
    block_rows = min(block_rows, _round_up(max(n, 1), 8))
    n_pad = _round_up(n, block_rows)
    if n_pad != n:
        x2 = jnp.pad(x2, ((0, n_pad - n), (0, 0)))

    # bf16 matmul operands; biases stay f32 (added to the f32 accumulator).
    x_bf16 = x2.astype(jnp.bfloat16)
    w1_bf16 = w1.astype(jnp.bfloat16)
    w2_bf16 = w2.astype(jnp.bfloat16)
    b1_2d = b1.reshape(1, hdim).astype(jnp.float32)
    b2_2d = b2.reshape(1, c).astype(jnp.float32)

    grid = (n_pad // block_rows,)

    def _const_spec(shape):
        # Weights/biases never change block -> single-buffer them to save VMEM.
        return pl.BlockSpec(shape, lambda i: (0,) * len(shape),
                            pipeline_mode=pl.Buffered(1))

    in_specs = [
        pl.BlockSpec((block_rows, c), lambda i: (i, 0)),   # x tile
        _const_spec((c, hdim)),                            # w1
        _const_spec((1, hdim)),                            # b1
        _const_spec((hdim, c)),                            # w2
        _const_spec((1, c)),                               # b2
    ]
    args = [x_bf16, w1_bf16, b1_2d, w2_bf16, b2_2d]

    if training:
        if dropout_key is None:
            dropout_key = jax.random.PRNGKey(0)
        bits = jax.random.bits(dropout_key, (n_pad, c), dtype=jnp.uint32)
        in_specs.append(pl.BlockSpec((block_rows, c), lambda i: (i, 0)))
        args.append(bits)

    keep_prob = 1.0 - DROPOUT_P
    kernel = functools.partial(
        _ffn_kernel,
        keep_threshold=int(keep_prob * (1 << 32)),
        inv_keep_prob=1.0 / keep_prob,
        training=training)

    out = pl.pallas_call(
        kernel,
        out_shape=jax.ShapeDtypeStruct((n_pad, c), x.dtype),
        grid=grid,
        in_specs=in_specs,
        out_specs=pl.BlockSpec((block_rows, c), lambda i: (i, 0)),
        compiler_params=pltpu.CompilerParams(
            dimension_semantics=("parallel",)),  # tiles independent -> megacore
    )(*args)

    if n_pad != n:
        out = out[:n]
    return out.reshape(orig_shape)


def init_params(key, n_embed):
    """Deterministic init mimicking torch.nn.Linear default (uniform +-1/sqrt(fan_in))."""
    hidden = 4 * n_embed
    k1, k2, k3, k4 = jax.random.split(key, 4)
    bound1 = 1.0 / jnp.sqrt(n_embed)
    bound2 = 1.0 / jnp.sqrt(hidden)
    # Stored as [in, out]  (== torch weight.T)
    w1 = jax.random.uniform(k1, (n_embed, hidden), jnp.float32, -bound1, bound1)
    b1 = jax.random.uniform(k2, (hidden,), jnp.float32, -bound1, bound1)
    w2 = jax.random.uniform(k3, (hidden, n_embed), jnp.float32, -bound2, bound2)
    b2 = jax.random.uniform(k4, (n_embed,), jnp.float32, -bound2, bound2)
    return w1, b1, w2, b2


if __name__ == "__main__":
    key = jax.random.PRNGKey(0)
    pkey, xkey, dkey = jax.random.split(key, 3)

    batch, seq = 2, 8
    w1, b1, w2, b2 = init_params(pkey, N_EMBED)
    x = jax.random.normal(xkey, (batch, seq, N_EMBED), jnp.float32)

    # Training-mode run (dropout applied with a fixed jax.random key).
    y_train = feed_forward(x, w1, b1, w2, b2, dropout_key=dkey, training=True)
    y_train = jax.block_until_ready(y_train)
    assert y_train.shape == x.shape and y_train.dtype == x.dtype
    assert bool(jnp.all(jnp.isfinite(y_train)))

    # Eval-mode (no dropout) vs a pure-JAX reference with the same bf16 casts.
    y_eval = jax.block_until_ready(
        feed_forward(x, w1, b1, w2, b2, training=False))
    x2 = x.reshape(-1, N_EMBED)
    h_ref = jnp.maximum(
        jnp.dot(x2.astype(jnp.bfloat16), w1.astype(jnp.bfloat16),
                preferred_element_type=jnp.float32) + b1, 0.0)
    ref = (jnp.dot(h_ref.astype(jnp.bfloat16), w2.astype(jnp.bfloat16),
                   preferred_element_type=jnp.float32) + b2).reshape(x.shape)
    err = jnp.max(jnp.abs(y_eval - ref))
    assert err < 2e-2, f"eval mismatch: {err}"

    # Training output must equal eval output masked + rescaled with the same bits.
    n = batch * seq
    bits = jax.random.bits(dkey, (n, N_EMBED), dtype=jnp.uint32)
    keep = (bits < jnp.uint32(int((1.0 - DROPOUT_P) * (1 << 32)))).reshape(x.shape)
    expected = jnp.where(keep, y_eval * (1.0 / (1.0 - DROPOUT_P)), 0.0)
    derr = jnp.max(jnp.abs(y_train - expected))
    assert derr < 1e-3, f"dropout mismatch: {derr}"

    print("KERNEL_OK")
</pallas_src>

<mosaic_0001>
module attributes {stable_mosaic.version = 11 : i64} {
  func.func @_ffn_kernel(%arg0: i32, %arg1: memref<16x256xbf16, #tpu.memory_space<vmem>>, %arg2: memref<256x1024xbf16, #tpu.memory_space<vmem>>, %arg3: memref<1x1024xf32, #tpu.memory_space<vmem>>, %arg4: memref<1024x256xbf16, #tpu.memory_space<vmem>>, %arg5: memref<1x256xf32, #tpu.memory_space<vmem>>, %arg6: memref<16x256xi32, #tpu.memory_space<vmem>>, %arg7: memref<16x256xf32, #tpu.memory_space<vmem>>) attributes {dimension_semantics = [#tpu.dimension_semantics<parallel>], iteration_bounds = array<i64: 1>, scalar_prefetch = 0 : i64, scratch_operands = 0 : i64, tpu.core_type = #tpu.core_type<tc>, window_params = [{transform_indices = @transform_0, window_bounds = array<i64: 16, 256>}, {pipeline_mode = #tpu.pipeline_mode<synchronous>, transform_indices = @transform_1, window_bounds = array<i64: 256, 1024>}, {pipeline_mode = #tpu.pipeline_mode<synchronous>, transform_indices = @transform_2, window_bounds = array<i64: 1, 1024>}, {pipeline_mode = #tpu.pipeline_mode<synchronous>, transform_indices = @transform_3, window_bounds = array<i64: 1024, 256>}, {pipeline_mode = #tpu.pipeline_mode<synchronous>, transform_indices = @transform_4, window_bounds = array<i64: 1, 256>}, {transform_indices = @transform_5, window_bounds = array<i64: 16, 256>}, {transform_indices = @transform_6, window_bounds = array<i64: 16, 256>}]} {
    %c0 = arith.constant 0 : index
    %c0_0 = arith.constant 0 : index
    %0 = vector.load %arg1[%c0, %c0_0] : memref<16x256xbf16, #tpu.memory_space<vmem>>, vector<16x256xbf16>
    %c0_1 = arith.constant 0 : index
    %c0_2 = arith.constant 0 : index
    %1 = vector.load %arg2[%c0_1, %c0_2] : memref<256x1024xbf16, #tpu.memory_space<vmem>>, vector<256x1024xbf16>
    %cst = arith.constant dense<0.000000e+00> : vector<16x1024xf32>
    %2 = tpu.matmul %0, %1, %cst {dimension_numbers = #tpu.dot_dimension_numbers<[1], [0], [0], [1], [0, 0, 1, 1], [], []>} : vector<16x256xbf16>, vector<256x1024xbf16>, vector<16x1024xf32> -> vector<16x1024xf32>
    %c0_3 = arith.constant 0 : index
    %c0_4 = arith.constant 0 : index
    %3 = vector.load %arg3[%c0_3, %c0_4] : memref<1x1024xf32, #tpu.memory_space<vmem>>, vector<1x1024xf32>
    %4 = vector.broadcast %3 : vector<1x1024xf32> to vector<16x1024xf32>
    %5 = arith.addf %2, %4 : vector<16x1024xf32>
    %cst_5 = arith.constant 0.000000e+00 : f32
    %6 = vector.broadcast %cst_5 : f32 to vector<16x1024xf32>
    %7 = arith.maximumf %5, %6 : vector<16x1024xf32>
    %8 = arith.truncf %7 : vector<16x1024xf32> to vector<16x1024xbf16>
    %c0_6 = arith.constant 0 : index
    %c0_7 = arith.constant 0 : index
    %9 = vector.load %arg4[%c0_6, %c0_7] : memref<1024x256xbf16, #tpu.memory_space<vmem>>, vector<1024x256xbf16>
    %cst_8 = arith.constant dense<0.000000e+00> : vector<16x256xf32>
    %10 = tpu.matmul %8, %9, %cst_8 {dimension_numbers = #tpu.dot_dimension_numbers<[1], [0], [0], [1], [0, 0, 1, 1], [], []>} : vector<16x1024xbf16>, vector<1024x256xbf16>, vector<16x256xf32> -> vector<16x256xf32>
    %c0_9 = arith.constant 0 : index
    %c0_10 = arith.constant 0 : index
    %11 = vector.load %arg5[%c0_9, %c0_10] : memref<1x256xf32, #tpu.memory_space<vmem>>, vector<1x256xf32>
    %12 = vector.broadcast %11 : vector<1x256xf32> to vector<16x256xf32>
    %13 = arith.addf %10, %12 : vector<16x256xf32>
    %c0_11 = arith.constant 0 : index
    %c0_12 = arith.constant 0 : index
    %14 = vector.load %arg6[%c0_11, %c0_12] : memref<16x256xi32, #tpu.memory_space<vmem>>, vector<16x256xi32>
    %c-1288490189_i32 = arith.constant -1288490189 : i32
    %15 = vector.broadcast %c-1288490189_i32 : i32 to vector<16x256xi32>
    %16 = arith.cmpi ult, %14, %15 : vector<16x256xi32>
    %cst_13 = arith.constant 1.42857146 : f32
    %17 = vector.broadcast %cst_13 : f32 to vector<16x256xf32>
    %18 = arith.mulf %13, %17 : vector<16x256xf32>
    %cst_14 = arith.constant 0.000000e+00 : f32
    %19 = vector.broadcast %cst_14 : f32 to vector<16x256xf32>
    %20 = arith.select %16, %18, %19 : vector<16x256xi1>, vector<16x256xf32>
    %c0_15 = arith.constant 0 : index
    %c0_16 = arith.constant 0 : index
    %21 = vector.load %arg7[%c0_15, %c0_16] : memref<16x256xf32, #tpu.memory_space<vmem>>, vector<16x256xf32>
    tpu.vector_store %arg7[%c0_15, %c0_16], %20 {strides = array<i32>} : memref<16x256xf32, #tpu.memory_space<vmem>>, vector<16x256xf32>,
    return
  }
  func.func @transform_0(%arg0: i32) -> (i32, i32) {
    %c0_i32 = arith.constant 0 : i32
    %c0_i32_0 = arith.constant 0 : i32
    return %arg0, %c0_i32 : i32, i32
  }
  func.func @transform_1(%arg0: i32) -> (i32, i32) {
    %c0_i32 = arith.constant 0 : i32
    %c0_i32_0 = arith.constant 0 : i32
    %c0_i32_1 = arith.constant 0 : i32
    return %c0_i32, %c0_i32_0 : i32, i32
  }
  func.func @transform_2(%arg0: i32) -> (i32, i32) {
    %c0_i32 = arith.constant 0 : i32
    %c0_i32_0 = arith.constant 0 : i32
    %c0_i32_1 = arith.constant 0 : i32
    return %c0_i32, %c0_i32_0 : i32, i32
  }
  func.func @transform_3(%arg0: i32) -> (i32, i32) {
    %c0_i32 = arith.constant 0 : i32
    %c0_i32_0 = arith.constant 0 : i32
    %c0_i32_1 = arith.constant 0 : i32
    return %c0_i32, %c0_i32_0 : i32, i32
  }
  func.func @transform_4(%arg0: i32) -> (i32, i32) {
    %c0_i32 = arith.constant 0 : i32
    %c0_i32_0 = arith.constant 0 : i32
    %c0_i32_1 = arith.constant 0 : i32
    return %c0_i32, %c0_i32_0 : i32, i32
  }
  func.func @transform_5(%arg0: i32) -> (i32, i32) {
    %c0_i32 = arith.constant 0 : i32
    %c0_i32_0 = arith.constant 0 : i32
    return %arg0, %c0_i32 : i32, i32
  }
  func.func @transform_6(%arg0: i32) -> (i32, i32) {
    %c0_i32 = arith.constant 0 : i32
    %c0_i32_0 = arith.constant 0 : i32
    return %arg0, %c0_i32 : i32, i32
  }
}

</mosaic_0001>

<llo_original>
// kernel: tpu_custom_call.1
$region0: #{tpu_custom_call.1}
  #allocation0 [shape = 'u32[]', space=smem, size = 0x4, offset = 0x4, fixed_abs, tag = 'smem constant byte address 0x4 - core index']
  #allocation1 [shape = 'u32[144,128]{1,0:T(1,128)}', space=vmem, size = 0x12000, scoped, tag = 'internal scratch']
  %s0 = inlined_call_operand.hbm [shape: bf16[16,256], index: 0, kind: input, shape index: {}]
  %s1 = inlined_call_operand.hbm [shape: bf16[256,1024], index: 1, kind: input, shape index: {}]
  %s2 = inlined_call_operand.hbm [shape: f32[1,1024], index: 2, kind: input, shape index: {}]
  %s3 = inlined_call_operand.hbm [shape: bf16[1024,256], index: 3, kind: input, shape index: {}]
  %s4 = inlined_call_operand.vmem [shape: f32[1,256], index: 4, kind: input, shape index: {}]
  %s5 = inlined_call_operand.hbm [shape: u32[16,256], index: 5, kind: input, shape index: {}]
  %s6 = inlined_call_operand.hbm [shape: f32[16,256], index: 6, kind: output, shape index: {}]
  %s7 = sld [smem:[#allocation0]]
  $region54: #{tpu_custom_call.1} parent=0
    _
  %s9 = ssub.s32 1, %s7
  %s10 = scalar_select 0, %s9, %s7
  $region1: #{tpu_custom_call.1} parent=0
    #allocation2 [shape = 'u8[8192]{0}', space=vmem, size = 0x2000, scoped, tag = 'input window, operand 0, single buffered']
    #allocation3 [shape = 's32[1]{0}', space=sflag, size = 0x4, scoped, tag = 'scoped memory for tpu_custom_call.1']
    #allocation4 [shape = 's32[1]{0}', space=sflag, size = 0x4, scoped, tag = 'scoped memory for tpu_custom_call.1']
    #allocation5 [shape = 'u8[524288]{0}', space=vmem, size = 0x80000, scoped, tag = 'input window, operand 1, single buffered']
    #allocation6 [shape = 's32[1]{0}', space=sflag, size = 0x4, scoped, tag = 'scoped memory for tpu_custom_call.1']
    #allocation7 [shape = 'u8[4096]{0}', space=vmem, size = 0x1000, scoped, tag = 'input window, operand 2, single buffered']
    #allocation8 [shape = 'u8[524288]{0}', space=vmem, size = 0x80000, scoped, tag = 'input window, operand 3, single buffered']
    #allocation9 [shape = 's32[1]{0}', space=sflag, size = 0x4, scoped, tag = 'scoped memory for tpu_custom_call.1']
    #allocation10 [shape = 'u8[16384]{0}', space=vmem, size = 0x4000, scoped, tag = 'input window, operand 5, single buffered']
    #allocation11 [shape = 'u8[16384]{0}', space=vmem, size = 0x4000, scoped, tag = 'output window, operand 0, single buffered']
    %11 = vsyncpa [#allocation3], 0
    %12 = vsyncpa [#allocation6], 0
    %13 = vsyncpa [#allocation9], 0
    %14 = vsyncpa [#allocation4], 0
    // Predicated region
    $region2: #{tpu_custom_call.1} parent=1 // pred_check
      _
    $region3: #{tpu_custom_call.1} parent=1 // pred_check_branch
      %16 = sbr.rel (0) target = $region5
    $region4: #{tpu_custom_call.1} parent=1 // pred_region
      %s18 = ssub.s32 256, 256
      %19 = vsyncadd [#allocation3], %s18
      %s20 = sshll.u32 [#allocation2], 4
      %s21 = int_to_ptr.vmem [resolvable:$true] %s20
      %26 = dma.hbm_to_vmem [thread:$0]  %s0, 256, %s21, [#allocation3], 128, 128, 8
    $region5: #{tpu_custom_call.1} parent=1 // pred_fallthru
      _
    // Predicated region
    $region6: #{tpu_custom_call.1} parent=1 // pred_check
      _
    $region7: #{tpu_custom_call.1} parent=1 // pred_check_branch
      %28 = sbr.rel (0) target = $region9
    $region8: #{tpu_custom_call.1} parent=1 // pred_region
      %s30 = ssub.s32 16384, 16384
      %31 = vsyncadd [#allocation6], %s30
      %s32 = sshll.u32 [#allocation5], 4
      %s33 = int_to_ptr.vmem [resolvable:$true] %s32
      %38 = dma.hbm_to_vmem [thread:$0]  %s1, 16384, %s33, [#allocation6], 512, 512, 32
    $region9: #{tpu_custom_call.1} parent=1 // pred_fallthru
      _
    // Predicated region
    $region10: #{tpu_custom_call.1} parent=1 // pred_check
      _
    $region11: #{tpu_custom_call.1} parent=1 // pred_check_branch
      %40 = sbr.rel (0) target = $region13
    $region12: #{tpu_custom_call.1} parent=1 // pred_region
      %s42 = ssub.s32 128, 128
      %43 = vsyncadd [#allocation6], %s42
      %s45 = sshll.u32 [#allocation7], 4
      %s46 = int_to_ptr.vmem [resolvable:$true] %s45
      %48 = dma.hbm_to_vmem [thread:$0]  %s2, 128, %s46, [#allocation6]
    $region13: #{tpu_custom_call.1} parent=1 // pred_fallthru
      _
    // Predicated region
    $region14: #{tpu_custom_call.1} parent=1 // pred_check
      _
    $region15: #{tpu_custom_call.1} parent=1 // pred_check_branch
      %50 = sbr.rel (0) target = $region17
    $region16: #{tpu_custom_call.1} parent=1 // pred_region
      %s52 = ssub.s32 16384, 16384
      %53 = vsyncadd [#allocation9], %s52
      %s54 = sshll.u32 [#allocation8], 4
      %s55 = int_to_ptr.vmem [resolvable:$true] %s54
      %60 = dma.hbm_to_vmem [thread:$0]  %s3, 16384, %s55, [#allocation9], 128, 128, 8
    $region17: #{tpu_custom_call.1} parent=1 // pred_fallthru
      _
    // Predicated region
    $region18: #{tpu_custom_call.1} parent=1 // pred_check
      _
    $region19: #{tpu_custom_call.1} parent=1 // pred_check_branch
      %62 = sbr.rel (0) target = $region21
    $region20: #{tpu_custom_call.1} parent=1 // pred_region
      _
    $region21: #{tpu_custom_call.1} parent=1 // pred_fallthru
      _
    // Predicated region
    $region22: #{tpu_custom_call.1} parent=1 // pred_check
      _
    $region23: #{tpu_custom_call.1} parent=1 // pred_check_branch
      %64 = sbr.rel (0) target = $region25
    $region24: #{tpu_custom_call.1} parent=1 // pred_region
      %s66 = ssub.s32 512, 512
      %67 = vsyncadd [#allocation9], %s66
      %s68 = sshll.u32 [#allocation10], 4
      %s69 = int_to_ptr.vmem [resolvable:$true] %s68
      %74 = dma.hbm_to_vmem [thread:$0]  %s5, 512, %s69, [#allocation9], 256, 256, 16
    $region25: #{tpu_custom_call.1} parent=1 // pred_fallthru
      _
    // Predicated region
    $region26: #{tpu_custom_call.1} parent=1 // pred_check
      _
    $region27: #{tpu_custom_call.1} parent=1 // pred_check_branch
      %76 = sbr.rel (0) target = $region29
    $region28: #{tpu_custom_call.1} parent=1 // pred_region
      %77 = dma.done [#allocation3], 256
    $region29: #{tpu_custom_call.1} parent=1 // pred_fallthru
      _
    // Predicated region
    $region30: #{tpu_custom_call.1} parent=1 // pred_check
      _
    $region31: #{tpu_custom_call.1} parent=1 // pred_check_branch
      %79 = sbr.rel (0) target = $region33
    $region32: #{tpu_custom_call.1} parent=1 // pred_region
      %80 = dma.done [#allocation6], 16384
    $region33: #{tpu_custom_call.1} parent=1 // pred_fallthru
      _
    // Predicated region
    $region34: #{tpu_custom_call.1} parent=1 // pred_check
      _
    $region35: #{tpu_custom_call.1} parent=1 // pred_check_branch
      %82 = sbr.rel (0) target = $region37
    $region36: #{tpu_custom_call.1} parent=1 // pred_region
      %83 = dma.done [#allocation6], 128
    $region37: #{tpu_custom_call.1} parent=1 // pred_fallthru
      _
    // Predicated region
    $region38: #{tpu_custom_call.1} parent=1 // pred_check
      _
    $region39: #{tpu_custom_call.1} parent=1 // pred_check_branch
      %85 = sbr.rel (0) target = $region41
    $region40: #{tpu_custom_call.1} parent=1 // pred_region
      %86 = dma.done [#allocation9], 16384
    $region41: #{tpu_custom_call.1} parent=1 // pred_fallthru
      _
    // Predicated region
    $region42: #{tpu_custom_call.1} parent=1 // pred_check
      _
    $region43: #{tpu_custom_call.1} parent=1 // pred_check_branch
      %88 = sbr.rel (0) target = $region45
    $region44: #{tpu_custom_call.1} parent=1 // pred_region
      %89 = dma.done [#allocation9], 512
    $region45: #{tpu_custom_call.1} parent=1 // pred_fallthru
      _
    %v90 = vld [vmem:[#allocation2] sm:$0xff]
    %v91 = vld [vmem:[#allocation2 + $0x8] sm:$0xff]
    %v92 = vld [vmem:[#allocation5] sm:$0xff]
    %v93 = vld [vmem:[#allocation5 + $0x8] sm:$0xff]
    %v94 = vld [vmem:[#allocation5 + $0x10] sm:$0xff]
    %v95 = vld [vmem:[#allocation5 + $0x18] sm:$0xff]
    %v96 = vld [vmem:[#allocation5 + $0x20] sm:$0xff]
    %v97 = vld [vmem:[#allocation5 + $0x28] sm:$0xff]
    %v98 = vld [vmem:[#allocation5 + $0x30] sm:$0xff]
    %v99 = vld [vmem:[#allocation5 + $0x38] sm:$0xff]
    %v100 = vld [vmem:[#allocation5 + $0x40] sm:$0xff]
    %v101 = vld [vmem:[#allocation5 + $0x48] sm:$0xff]
    %v102 = vld [vmem:[#allocation5 + $0x50] sm:$0xff]
    %v103 = vld [vmem:[#allocation5 + $0x58] sm:$0xff]
    %v104 = vld [vmem:[#allocation5 + $0x60] sm:$0xff]
    %v105 = vld [vmem:[#allocation5 + $0x68] sm:$0xff]
    %v106 = vld [vmem:[#allocation5 + $0x70] sm:$0xff]
    %v107 = vld [vmem:[#allocation5 + $0x78] sm:$0xff]
    %v108 = vld [vmem:[#allocation5 + $0x80] sm:$0xff]
    %v109 = vld [vmem:[#allocation5 + $0x88] sm:$0xff]
    %v110 = vld [vmem:[#allocation5 + $0x90] sm:$0xff]
    %v111 = vld [vmem:[#allocation5 + $0x98] sm:$0xff]
    %v112 = vld [vmem:[#allocation5 + $0xa0] sm:$0xff]
    %v113 = vld [vmem:[#allocation5 + $0xa8] sm:$0xff]
    %v114 = vld [vmem:[#allocation5 + $0xb0] sm:$0xff]
    %v115 = vld [vmem:[#allocation5 + $0xb8] sm:$0xff]
    %v116 = vld [vmem:[#allocation5 + $0xc0] sm:$0xff]
    %v117 = vld [vmem:[#allocation5 + $0xc8] sm:$0xff]
    %v118 = vld [vmem:[#allocation5 + $0xd0] sm:$0xff]
    %v119 = vld [vmem:[#allocation5 + $0xd8] sm:$0xff]
    %v120 = vld [vmem:[#allocation5 + $0xe0] sm:$0xff]
    %v121 = vld [vmem:[#allocation5 + $0xe8] sm:$0xff]
    %v122 = vld [vmem:[#allocation5 + $0xf0] sm:$0xff]
    %v123 = vld [vmem:[#allocation5 + $0xf8] sm:$0xff]
    %v124 = vld [vmem:[#allocation5 + $0x100] sm:$0xff]
    %v125 = vld [vmem:[#allocation5 + $0x108] sm:$0xff]
    %v126 = vld [vmem:[#allocation5 + $0x110] sm:$0xff]
    %v127 = vld [vmem:[#allocation5 + $0x118] sm:$0xff]
    %v128 = vld [vmem:[#allocation5 + $0x120] sm:$0xff]
    %v129 = vld [vmem:[#allocation5 + $0x128] sm:$0xff]
    %v130 = vld [vmem:[#allocation5 + $0x130] sm:$0xff]
    %v131 = vld [vmem:[#allocation5 + $0x138] sm:$0xff]
    %v132 = vld [vmem:[#allocation5 + $0x140] sm:$0xff]
    %v133 = vld [vmem:[#allocation5 + $0x148] sm:$0xff]
    %v134 = vld [vmem:[#allocation5 + $0x150] sm:$0xff]
    %v135 = vld [vmem:[#allocation5 + $0x158] sm:$0xff]
    %v136 = vld [vmem:[#allocation5 + $0x160] sm:$0xff]
    %v137 = vld [vmem:[#allocation5 + $0x168] sm:$0xff]
    %v138 = vld [vmem:[#allocation5 + $0x170] sm:$0xff]
    %v139 = vld [vmem:[#allocation5 + $0x178] sm:$0xff]
    %v140 = vld [vmem:[#allocation5 + $0x180] sm:$0xff]
    %v141 = vld [vmem:[#allocation5 + $0x188] sm:$0xff]
    %v142 = vld [vmem:[#allocation5 + $0x190] sm:$0xff]
    %v143 = vld [vmem:[#allocation5 + $0x198] sm:$0xff]
    %v144 = vld [vmem:[#allocation5 + $0x1a0] sm:$0xff]
    %v145 = vld [vmem:[#allocation5 + $0x1a8] sm:$0xff]
    %v146 = vld [vmem:[#allocation5 + $0x1b0] sm:$0xff]
    %v147 = vld [vmem:[#allocation5 + $0x1b8] sm:$0xff]
    %v148 = vld [vmem:[#allocation5 + $0x1c0] sm:$0xff]
    %v149 = vld [vmem:[#allocation5 + $0x1c8] sm:$0xff]
    %v150 = vld [vmem:[#allocation5 + $0x1d0] sm:$0xff]
    %v151 = vld [vmem:[#allocation5 + $0x1d8] sm:$0xff]
    %v152 = vld [vmem:[#allocation5 + $0x1e0] sm:$0xff]
    %v153 = vld [vmem:[#allocation5 + $0x1e8] sm:$0xff]
    %v154 = vld [vmem:[#allocation5 + $0x1f0] sm:$0xff]
    %v155 = vld [vmem:[#allocation5 + $0x1f8] sm:$0xff]
    %v156 = vld [vmem:[#allocation5 + $0x200] sm:$0xff]
    %v157 = vld [vmem:[#allocation5 + $0x208] sm:$0xff]
    %v158 = vld [vmem:[#allocation5 + $0x210] sm:$0xff]
    %v159 = vld [vmem:[#allocation5 + $0x218] sm:$0xff]
    %v160 = vld [vmem:[#allocation5 + $0x220] sm:$0xff]
    %v161 = vld [vmem:[#allocation5 + $0x228] sm:$0xff]
    %v162 = vld [vmem:[#allocation5 + $0x230] sm:$0xff]
    %v163 = vld [vmem:[#allocation5 + $0x238] sm:$0xff]
    %v164 = vld [vmem:[#allocation5 + $0x240] sm:$0xff]
    %v165 = vld [vmem:[#allocation5 + $0x248] sm:$0xff]
    %v166 = vld [vmem:[#allocation5 + $0x250] sm:$0xff]
    %v167 = vld [vmem:[#allocation5 + $0x258] sm:$0xff]
    %v168 = vld [vmem:[#allocation5 + $0x260] sm:$0xff]
    %v169 = vld [vmem:[#allocation5 + $0x268] sm:$0xff]
    %v170 = vld [vmem:[#allocation5 + $0x270] sm:$0xff]
    %v171 = vld [vmem:[#allocation5 + $0x278] sm:$0xff]
    %v172 = vld [vmem:[#allocation5 + $0x280] sm:$0xff]
    %v173 = vld [vmem:[#allocation5 + $0x288] sm:$0xff]
    %v174 = vld [vmem:[#allocation5 + $0x290] sm:$0xff]
    %v175 = vld [vmem:[#allocation5 + $0x298] sm:$0xff]
    %v176 = vld [vmem:[#allocation5 + $0x2a0] sm:$0xff]
    %v177 = vld [vmem:[#allocation5 + $0x2a8] sm:$0xff]
    %v178 = vld [vmem:[#allocation5 + $0x2b0] sm:$0xff]
    %v179 = vld [vmem:[#allocation5 + $0x2b8] sm:$0xff]
    %v180 = vld [vmem:[#allocation5 + $0x2c0] sm:$0xff]
    %v181 = vld [vmem:[#allocation5 + $0x2c8] sm:$0xff]
    %v182 = vld [vmem:[#allocation5 + $0x2d0] sm:$0xff]
    %v183 = vld [vmem:[#allocation5 + $0x2d8] sm:$0xff]
    %v184 = vld [vmem:[#allocation5 + $0x2e0] sm:$0xff]
    %v185 = vld [vmem:[#allocation5 + $0x2e8] sm:$0xff]
    %v186 = vld [vmem:[#allocation5 + $0x2f0] sm:$0xff]
    %v187 = vld [vmem:[#allocation5 + $0x2f8] sm:$0xff]
    %v188 = vld [vmem:[#allocation5 + $0x300] sm:$0xff]
    %v189 = vld [vmem:[#allocation5 + $0x308] sm:$0xff]
    %v190 = vld [vmem:[#allocation5 + $0x310] sm:$0xff]
    %v191 = vld [vmem:[#allocation5 + $0x318] sm:$0xff]
    %v192 = vld [vmem:[#allocation5 + $0x320] sm:$0xff]
    %v193 = vld [vmem:[#allocation5 + $0x328] sm:$0xff]
    %v194 = vld [vmem:[#allocation5 + $0x330] sm:$0xff]
    %v195 = vld [vmem:[#allocation5 + $0x338] sm:$0xff]
    %v196 = vld [vmem:[#allocation5 + $0x340] sm:$0xff]
    %v197 = vld [vmem:[#allocation5 + $0x348] sm:$0xff]
    %v198 = vld [vmem:[#allocation5 + $0x350] sm:$0xff]
    %v199 = vld [vmem:[#allocation5 + $0x358] sm:$0xff]
    %v200 = vld [vmem:[#allocation5 + $0x360] sm:$0xff]
    %v201 = vld [vmem:[#allocation5 + $0x368] sm:$0xff]
    %v202 = vld [vmem:[#allocation5 + $0x370] sm:$0xff]
    %v203 = vld [vmem:[#allocation5 + $0x378] sm:$0xff]
    %v204 = vld [vmem:[#allocation5 + $0x380] sm:$0xff]
    %v205 = vld [vmem:[#allocation5 + $0x388] sm:$0xff]
    %v206 = vld [vmem:[#allocation5 + $0x390] sm:$0xff]
    %v207 = vld [vmem:[#allocation5 + $0x398] sm:$0xff]
    %v208 = vld [vmem:[#allocation5 + $0x3a0] sm:$0xff]
    %v209 = vld [vmem:[#allocation5 + $0x3a8] sm:$0xff]
    %v210 = vld [vmem:[#allocation5 + $0x3b0] sm:$0xff]
    %v211 = vld [vmem:[#allocation5 + $0x3b8] sm:$0xff]
    %v212 = vld [vmem:[#allocation5 + $0x3c0] sm:$0xff]
    %v213 = vld [vmem:[#allocation5 + $0x3c8] sm:$0xff]
    %v214 = vld [vmem:[#allocation5 + $0x3d0] sm:$0xff]
    %v215 = vld [vmem:[#allocation5 + $0x3d8] sm:$0xff]
    %v216 = vld [vmem:[#allocation5 + $0x3e0] sm:$0xff]
    %v217 = vld [vmem:[#allocation5 + $0x3e8] sm:$0xff]
    %v218 = vld [vmem:[#allocation5 + $0x3f0] sm:$0xff]
    %v219 = vld [vmem:[#allocation5 + $0x3f8] sm:$0xff]
    %v220 = vld [vmem:[#allocation7] sm:$0xff]
    %v222 = vlaneseq
    %v223 = vshrl.u32 %v222, 7
    %v224 = vsub.s32 0, %v223
    %v225 = vrot.slane %v220, %v224
    %v226 = vlaneseq
    %v227 = vshrl.u32 %v226, 7
    %v228 = vsub.s32 1, %v227
    %v229 = vrot.slane %v220, %v228
    %v230 = vlaneseq
    %v231 = vshrl.u32 %v230, 7
    %v232 = vsub.s32 2, %v231
    %v233 = vrot.slane %v220, %v232
    %v234 = vlaneseq
    %v235 = vshrl.u32 %v234, 7
    %v236 = vsub.s32 3, %v235
    %v237 = vrot.slane %v220, %v236
    %v238 = vlaneseq
    %v239 = vshrl.u32 %v238, 7
    %v240 = vsub.s32 4, %v239
    %v241 = vrot.slane %v220, %v240
    %v242 = vlaneseq
    %v243 = vshrl.u32 %v242, 7
    %v244 = vsub.s32 5, %v243
    %v245 = vrot.slane %v220, %v244
    %v246 = vlaneseq
    %v247 = vshrl.u32 %v246, 7
    %v248 = vsub.s32 6, %v247
    %v249 = vrot.slane %v220, %v248
    %v250 = vlaneseq
    %v251 = vshrl.u32 %v250, 7
    %v252 = vsub.s32 7, %v251
    %v253 = vrot.slane %v220, %v252
    %v264 = vunpack.c.l.b16 %v90
    %v265 = vunpack.c.h.b16 %v90
    %v266 = vunpack.c.l.b16 %v91
    %v267 = vunpack.c.h.b16 %v91
    %v268 = vpack.c.b16 %v266, %v264
    %v269 = vpack.c.b16 %v267, %v265
    %v400 = vunpack.c.l.b16 %v92
    %v401 = vunpack.c.h.b16 %v92
    %v402 = vunpack.c.l.b16 %v93
    %v403 = vunpack.c.h.b16 %v93
    %v404 = vunpack.c.l.b16 %v94
    %v405 = vunpack.c.h.b16 %v94
    %v406 = vunpack.c.l.b16 %v95
    %v407 = vunpack.c.h.b16 %v95
    %v408 = vunpack.c.l.b16 %v96
    %v409 = vunpack.c.h.b16 %v96
    %v410 = vunpack.c.l.b16 %v97
    %v411 = vunpack.c.h.b16 %v97
    %v412 = vunpack.c.l.b16 %v98
    %v413 = vunpack.c.h.b16 %v98
    %v414 = vunpack.c.l.b16 %v99
    %v415 = vunpack.c.h.b16 %v99
    %v416 = vunpack.c.l.b16 %v100
    %v417 = vunpack.c.h.b16 %v100
    %v418 = vunpack.c.l.b16 %v101
    %v419 = vunpack.c.h.b16 %v101
    %v420 = vunpack.c.l.b16 %v102
    %v421 = vunpack.c.h.b16 %v102
    %v422 = vunpack.c.l.b16 %v103
    %v423 = vunpack.c.h.b16 %v103
    %v424 = vunpack.c.l.b16 %v104
    %v425 = vunpack.c.h.b16 %v104
    %v426 = vunpack.c.l.b16 %v105
    %v427 = vunpack.c.h.b16 %v105
    %v428 = vunpack.c.l.b16 %v106
    %v429 = vunpack.c.h.b16 %v106
    %v430 = vunpack.c.l.b16 %v107
    %v431 = vunpack.c.h.b16 %v107
    %v432 = vunpack.c.l.b16 %v108
    %v433 = vunpack.c.h.b16 %v108
    %v434 = vunpack.c.l.b16 %v109
    %v435 = vunpack.c.h.b16 %v109
    %v436 = vunpack.c.l.b16 %v110
    %v437 = vunpack.c.h.b16 %v110
    %v438 = vunpack.c.l.b16 %v111
    %v439 = vunpack.c.h.b16 %v111
    %v440 = vunpack.c.l.b16 %v112
    %v441 = vunpack.c.h.b16 %v112
    %v442 = vunpack.c.l.b16 %v113
    %v443 = vunpack.c.h.b16 %v113
    %v444 = vunpack.c.l.b16 %v114
    %v445 = vunpack.c.h.b16 %v114
    %v446 = vunpack.c.l.b16 %v115
    %v447 = vunpack.c.h.b16 %v115
    %v448 = vunpack.c.l.b16 %v116
    %v449 = vunpack.c.h.b16 %v116
    %v450 = vunpack.c.l.b16 %v117
    %v451 = vunpack.c.h.b16 %v117
    %v452 = vunpack.c.l.b16 %v118
    %v453 = vunpack.c.h.b16 %v118
    %v454 = vunpack.c.l.b16 %v119
    %v455 = vunpack.c.h.b16 %v119
    %v456 = vunpack.c.l.b16 %v120
    %v457 = vunpack.c.h.b16 %v120
    %v458 = vunpack.c.l.b16 %v121
    %v459 = vunpack.c.h.b16 %v121
    %v460 = vunpack.c.l.b16 %v122
    %v461 = vunpack.c.h.b16 %v122
    %v462 = vunpack.c.l.b16 %v123
    %v463 = vunpack.c.h.b16 %v123
    %v464 = vunpack.c.l.b16 %v124
    %v465 = vunpack.c.h.b16 %v124
    %v466 = vunpack.c.l.b16 %v125
    %v467 = vunpack.c.h.b16 %v125
    %v468 = vunpack.c.l.b16 %v126
    %v469 = vunpack.c.h.b16 %v126
    %v470 = vunpack.c.l.b16 %v127
    %v471 = vunpack.c.h.b16 %v127
    %v472 = vunpack.c.l.b16 %v128
    %v473 = vunpack.c.h.b16 %v128
    %v474 = vunpack.c.l.b16 %v129
    %v475 = vunpack.c.h.b16 %v129
    %v476 = vunpack.c.l.b16 %v130
    %v477 = vunpack.c.h.b16 %v130
    %v478 = vunpack.c.l.b16 %v131
    %v479 = vunpack.c.h.b16 %v131
    %v480 = vunpack.c.l.b16 %v132
    %v481 = vunpack.c.h.b16 %v132
    %v482 = vunpack.c.l.b16 %v133
    %v483 = vunpack.c.h.b16 %v133
    %v484 = vunpack.c.l.b16 %v134
    %v485 = vunpack.c.h.b16 %v134
    %v486 = vunpack.c.l.b16 %v135
    %v487 = vunpack.c.h.b16 %v135
    %v488 = vunpack.c.l.b16 %v136
    %v489 = vunpack.c.h.b16 %v136
    %v490 = vunpack.c.l.b16 %v137
    %v491 = vunpack.c.h.b16 %v137
    %v492 = vunpack.c.l.b16 %v138
    %v493 = vunpack.c.h.b16 %v138
    %v494 = vunpack.c.l.b16 %v139
    %v495 = vunpack.c.h.b16 %v139
    %v496 = vunpack.c.l.b16 %v140
    %v497 = vunpack.c.h.b16 %v140
    %v498 = vunpack.c.l.b16 %v141
    %v499 = vunpack.c.h.b16 %v141
    %v500 = vunpack.c.l.b16 %v142
    %v501 = vunpack.c.h.b16 %v142
    %v502 = vunpack.c.l.b16 %v143
    %v503 = vunpack.c.h.b16 %v143
    %v504 = vunpack.c.l.b16 %v144
    %v505 = vunpack.c.h.b16 %v144
    %v506 = vunpack.c.l.b16 %v145
    %v507 = vunpack.c.h.b16 %v145
    %v508 = vunpack.c.l.b16 %v146
    %v509 = vunpack.c.h.b16 %v146
    %v510 = vunpack.c.l.b16 %v147
    %v511 = vunpack.c.h.b16 %v147
    %v512 = vunpack.c.l.b16 %v148
    %v513 = vunpack.c.h.b16 %v148
    %v514 = vunpack.c.l.b16 %v149
    %v515 = vunpack.c.h.b16 %v149
    %v516 = vunpack.c.l.b16 %v150
    %v517 = vunpack.c.h.b16 %v150
    %v518 = vunpack.c.l.b16 %v151
    %v519 = vunpack.c.h.b16 %v151
    %v520 = vunpack.c.l.b16 %v152
    %v521 = vunpack.c.h.b16 %v152
    %v522 = vunpack.c.l.b16 %v153
    %v523 = vunpack.c.h.b16 %v153
    %v524 = vunpack.c.l.b16 %v154
    %v525 = vunpack.c.h.b16 %v154
    %v526 = vunpack.c.l.b16 %v155
    %v527 = vunpack.c.h.b16 %v155
    %v528 = vunpack.c.l.b16 %v156
    %v529 = vunpack.c.h.b16 %v156
    %v530 = vunpack.c.l.b16 %v157
    %v531 = vunpack.c.h.b16 %v157
    %v532 = vunpack.c.l.b16 %v158
    %v533 = vunpack.c.h.b16 %v158
    %v534 = vunpack.c.l.b16 %v159
    %v535 = vunpack.c.h.b16 %v159
    %v536 = vunpack.c.l.b16 %v160
    %v537 = vunpack.c.h.b16 %v160
    %v538 = vunpack.c.l.b16 %v161
    %v539 = vunpack.c.h.b16 %v161
    %v540 = vunpack.c.l.b16 %v162
    %v541 = vunpack.c.h.b16 %v162
    %v542 = vunpack.c.l.b16 %v163
    %v543 = vunpack.c.h.b16 %v163
    %v544 = vunpack.c.l.b16 %v164
    %v545 = vunpack.c.h.b16 %v164
    %v546 = vunpack.c.l.b16 %v165
    %v547 = vunpack.c.h.b16 %v165
    %v548 = vunpack.c.l.b16 %v166
    %v549 = vunpack.c.h.b16 %v166
    %v550 = vunpack.c.l.b16 %v167
    %v551 = vunpack.c.h.b16 %v167
    %v552 = vunpack.c.l.b16 %v168
    %v553 = vunpack.c.h.b16 %v168
    %v554 = vunpack.c.l.b16 %v169
    %v555 = vunpack.c.h.b16 %v169
    %v556 = vunpack.c.l.b16 %v170
    %v557 = vunpack.c.h.b16 %v170
    %v558 = vunpack.c.l.b16 %v171
    %v559 = vunpack.c.h.b16 %v171
    %v560 = vunpack.c.l.b16 %v172
    %v561 = vunpack.c.h.b16 %v172
    %v562 = vunpack.c.l.b16 %v173
    %v563 = vunpack.c.h.b16 %v173
    %v564 = vunpack.c.l.b16 %v174
    %v565 = vunpack.c.h.b16 %v174
    %v566 = vunpack.c.l.b16 %v175
    %v567 = vunpack.c.h.b16 %v175
    %v568 = vunpack.c.l.b16 %v176
    %v569 = vunpack.c.h.b16 %v176
    %v570 = vunpack.c.l.b16 %v177
    %v571 = vunpack.c.h.b16 %v177
    %v572 = vunpack.c.l.b16 %v178
    %v573 = vunpack.c.h.b16 %v178
    %v574 = vunpack.c.l.b16 %v179
    %v575 = vunpack.c.h.b16 %v179
    %v576 = vunpack.c.l.b16 %v180
    %v577 = vunpack.c.h.b16 %v180
    %v578 = vunpack.c.l.b16 %v181
    %v579 = vunpack.c.h.b16 %v181
    %v580 = vunpack.c.l.b16 %v182
    %v581 = vunpack.c.h.b16 %v182
    %v582 = vunpack.c.l.b16 %v183
    %v583 = vunpack.c.h.b16 %v183
    %v584 = vunpack.c.l.b16 %v184
    %v585 = vunpack.c.h.b16 %v184
    %v586 = vunpack.c.l.b16 %v185
    %v587 = vunpack.c.h.b16 %v185
    %v588 = vunpack.c.l.b16 %v186
    %v589 = vunpack.c.h.b16 %v186
    %v590 = vunpack.c.l.b16 %v187
    %v591 = vunpack.c.h.b16 %v187
    %v592 = vunpack.c.l.b16 %v188
    %v593 = vunpack.c.h.b16 %v188
    %v594 = vunpack.c.l.b16 %v189
    %v595 = vunpack.c.h.b16 %v189
    %v596 = vunpack.c.l.b16 %v190
    %v597 = vunpack.c.h.b16 %v190
    %v598 = vunpack.c.l.b16 %v191
    %v599 = vunpack.c.h.b16 %v191
    %v600 = vunpack.c.l.b16 %v192
    %v601 = vunpack.c.h.b16 %v192
    %v602 = vunpack.c.l.b16 %v193
    %v603 = vunpack.c.h.b16 %v193
    %v604 = vunpack.c.l.b16 %v194
    %v605 = vunpack.c.h.b16 %v194
    %v606 = vunpack.c.l.b16 %v195
    %v607 = vunpack.c.h.b16 %v195
    %v608 = vunpack.c.l.b16 %v196
    %v609 = vunpack.c.h.b16 %v196
    %v610 = vunpack.c.l.b16 %v197
    %v611 = vunpack.c.h.b16 %v197
    %v612 = vunpack.c.l.b16 %v198
    %v613 = vunpack.c.h.b16 %v198
    %v614 = vunpack.c.l.b16 %v199
    %v615 = vunpack.c.h.b16 %v199
    %v616 = vunpack.c.l.b16 %v200
    %v617 = vunpack.c.h.b16 %v200
    %v618 = vunpack.c.l.b16 %v201
    %v619 = vunpack.c.h.b16 %v201
    %v620 = vunpack.c.l.b16 %v202
    %v621 = vunpack.c.h.b16 %v202
    %v622 = vunpack.c.l.b16 %v203
    %v623 = vunpack.c.h.b16 %v203
    %v624 = vunpack.c.l.b16 %v204
    %v625 = vunpack.c.h.b16 %v204
    %v626 = vunpack.c.l.b16 %v205
    %v627 = vunpack.c.h.b16 %v205
    %v628 = vunpack.c.l.b16 %v206
    %v629 = vunpack.c.h.b16 %v206
    %v630 = vunpack.c.l.b16 %v207
    %v631 = vunpack.c.h.b16 %v207
    %v632 = vunpack.c.l.b16 %v208
    %v633 = vunpack.c.h.b16 %v208
    %v634 = vunpack.c.l.b16 %v209
    %v635 = vunpack.c.h.b16 %v209
    %v636 = vunpack.c.l.b16 %v210
    %v637 = vunpack.c.h.b16 %v210
    %v638 = vunpack.c.l.b16 %v211
    %v639 = vunpack.c.h.b16 %v211
    %v640 = vunpack.c.l.b16 %v212
    %v641 = vunpack.c.h.b16 %v212
    %v642 = vunpack.c.l.b16 %v213
    %v643 = vunpack.c.h.b16 %v213
    %v644 = vunpack.c.l.b16 %v214
    %v645 = vunpack.c.h.b16 %v214
    %v646 = vunpack.c.l.b16 %v215
    %v647 = vunpack.c.h.b16 %v215
    %v648 = vunpack.c.l.b16 %v216
    %v649 = vunpack.c.h.b16 %v216
    %v650 = vunpack.c.l.b16 %v217
    %v651 = vunpack.c.h.b16 %v217
    %v652 = vunpack.c.l.b16 %v218
    %v653 = vunpack.c.h.b16 %v218
    %v654 = vunpack.c.l.b16 %v219
    %v655 = vunpack.c.h.b16 %v219
    %v656 = vpack.c.b16 %v408, %v400
    %v657 = vpack.c.b16 %v409, %v401
    %v658 = vpack.c.b16 %v410, %v402
    %v659 = vpack.c.b16 %v411, %v403
    %v660 = vpack.c.b16 %v412, %v404
    %v661 = vpack.c.b16 %v413, %v405
    %v662 = vpack.c.b16 %v414, %v406
    %v663 = vpack.c.b16 %v415, %v407
    %v664 = vpack.c.b16 %v424, %v416
    %v665 = vpack.c.b16 %v425, %v417
    %v666 = vpack.c.b16 %v426, %v418
    %v667 = vpack.c.b16 %v427, %v419
    %v668 = vpack.c.b16 %v428, %v420
    %v669 = vpack.c.b16 %v429, %v421
    %v670 = vpack.c.b16 %v430, %v422
    %v671 = vpack.c.b16 %v431, %v423
    %v672 = vpack.c.b16 %v440, %v432
    %v673 = vpack.c.b16 %v441, %v433
    %v674 = vpack.c.b16 %v442, %v434
    %v675 = vpack.c.b16 %v443, %v435
    %v676 = vpack.c.b16 %v444, %v436
    %v677 = vpack.c.b16 %v445, %v437
    %v678 = vpack.c.b16 %v446, %v438
    %v679 = vpack.c.b16 %v447, %v439
    %v680 = vpack.c.b16 %v456, %v448
    %v681 = vpack.c.b16 %v457, %v449
    %v682 = vpack.c.b16 %v458, %v450
    %v683 = vpack.c.b16 %v459, %v451
    %v684 = vpack.c.b16 %v460, %v452
    %v685 = vpack.c.b16 %v461, %v453
    %v686 = vpack.c.b16 %v462, %v454
    %v687 = vpack.c.b16 %v463, %v455
    %v688 = vpack.c.b16 %v472, %v464
    %v689 = vpack.c.b16 %v473, %v465
    %v690 = vpack.c.b16 %v474, %v466
    %v691 = vpack.c.b16 %v475, %v467
    %v692 = vpack.c.b16 %v476, %v468
    %v693 = vpack.c.b16 %v477, %v469
    %v694 = vpack.c.b16 %v478, %v470
    %v695 = vpack.c.b16 %v479, %v471
    %v696 = vpack.c.b16 %v488, %v480
    %v697 = vpack.c.b16 %v489, %v481
    %v698 = vpack.c.b16 %v490, %v482
    %v699 = vpack.c.b16 %v491, %v483
    %v700 = vpack.c.b16 %v492, %v484
    %v701 = vpack.c.b16 %v493, %v485
    %v702 = vpack.c.b16 %v494, %v486
    %v703 = vpack.c.b16 %v495, %v487
    %v704 = vpack.c.b16 %v504, %v496
    %v705 = vpack.c.b16 %v505, %v497
    %v706 = vpack.c.b16 %v506, %v498
    %v707 = vpack.c.b16 %v507, %v499
    %v708 = vpack.c.b16 %v508, %v500
    %v709 = vpack.c.b16 %v509, %v501
    %v710 = vpack.c.b16 %v510, %v502
    %v711 = vpack.c.b16 %v511, %v503
    %v712 = vpack.c.b16 %v520, %v512
    %v713 = vpack.c.b16 %v521, %v513
    %v714 = vpack.c.b16 %v522, %v514
    %v715 = vpack.c.b16 %v523, %v515
    %v716 = vpack.c.b16 %v524, %v516
    %v717 = vpack.c.b16 %v525, %v517
    %v718 = vpack.c.b16 %v526, %v518
    %v719 = vpack.c.b16 %v527, %v519
    %v720 = vpack.c.b16 %v536, %v528
    %v721 = vpack.c.b16 %v537, %v529
    %v722 = vpack.c.b16 %v538, %v530
    %v723 = vpack.c.b16 %v539, %v531
    %v724 = vpack.c.b16 %v540, %v532
    %v725 = vpack.c.b16 %v541, %v533
    %v726 = vpack.c.b16 %v542, %v534
    %v727 = vpack.c.b16 %v543, %v535
    %v728 = vpack.c.b16 %v552, %v544
    %v729 = vpack.c.b16 %v553, %v545
    %v730 = vpack.c.b16 %v554, %v546
    %v731 = vpack.c.b16 %v555, %v547
    %v732 = vpack.c.b16 %v556, %v548
    %v733 = vpack.c.b16 %v557, %v549
    %v734 = vpack.c.b16 %v558, %v550
    %v735 = vpack.c.b16 %v559, %v551
    %v736 = vpack.c.b16 %v568, %v560
    %v737 = vpack.c.b16 %v569, %v561
    %v738 = vpack.c.b16 %v570, %v562
    %v739 = vpack.c.b16 %v571, %v563
    %v740 = vpack.c.b16 %v572, %v564
    %v741 = vpack.c.b16 %v573, %v565
    %v742 = vpack.c.b16 %v574, %v566
    %v743 = vpack.c.b16 %v575, %v567
    %v744 = vpack.c.b16 %v584, %v576
    %v745 = vpack.c.b16 %v585, %v577
    %v746 = vpack.c.b16 %v586, %v578
    %v747 = vpack.c.b16 %v587, %v579
    %v748 = vpack.c.b16 %v588, %v580
    %v749 = vpack.c.b16 %v589, %v581
    %v750 = vpack.c.b16 %v590, %v582
    %v751 = vpack.c.b16 %v591, %v583
    %v752 = vpack.c.b16 %v600, %v592
    %v753 = vpack.c.b16 %v601, %v593
    %v754 = vpack.c.b16 %v602, %v594
    %v755 = vpack.c.b16 %v603, %v595
    %v756 = vpack.c.b16 %v604, %v596
    %v757 = vpack.c.b16 %v605, %v597
    %v758 = vpack.c.b16 %v606, %v598
    %v759 = vpack.c.b16 %v607, %v599
    %v760 = vpack.c.b16 %v616, %v608
    %v761 = vpack.c.b16 %v617, %v609
    %v762 = vpack.c.b16 %v618, %v610
    %v763 = vpack.c.b16 %v619, %v611
    %v764 = vpack.c.b16 %v620, %v612
    %v765 = vpack.c.b16 %v621, %v613
    %v766 = vpack.c.b16 %v622, %v614
    %v767 = vpack.c.b16 %v623, %v615
    %v768 = vpack.c.b16 %v632, %v624
    %v769 = vpack.c.b16 %v633, %v625
    %v770 = vpack.c.b16 %v634, %v626
    %v771 = vpack.c.b16 %v635, %v627
    %v772 = vpack.c.b16 %v636, %v628
    %v773 = vpack.c.b16 %v637, %v629
    %v774 = vpack.c.b16 %v638, %v630
    %v775 = vpack.c.b16 %v639, %v631
    %v776 = vpack.c.b16 %v648, %v640
    %v777 = vpack.c.b16 %v649, %v641
    %v778 = vpack.c.b16 %v650, %v642
    %v779 = vpack.c.b16 %v651, %v643
    %v780 = vpack.c.b16 %v652, %v644
    %v781 = vpack.c.b16 %v653, %v645
    %v782 = vpack.c.b16 %v654, %v646
    %v783 = vpack.c.b16 %v655, %v647
    %912 = vmatprep.subr.bf16.mxu0 %v657
    %913 = vmatpush1.bf16.msra.mxu0 %v656
    %914 = vmatprep.subr.bf16.mxu0 %v665
    %915 = vmatpush1.bf16.msra.mxu0 %v664
    %916 = vmatprep.subr.bf16.mxu0 %v673
    %917 = vmatpush1.bf16.msra.mxu0 %v672
    %918 = vmatprep.subr.bf16.mxu0 %v681
    %919 = vmatpush1.bf16.msra.mxu0 %v680
    %920 = vmatprep.subr.bf16.mxu0 %v689
    %921 = vmatpush1.bf16.msra.mxu0 %v688
    %922 = vmatprep.subr.bf16.mxu0 %v697
    %923 = vmatpush1.bf16.msra.mxu0 %v696
    %924 = vmatprep.subr.bf16.mxu0 %v705
    %925 = vmatpush1.bf16.msra.mxu0 %v704
    %926 = vmatprep.subr.bf16.mxu0 %v713
    %927 = vmatpush1.bf16.msra.mxu0 %v712
    %928 = vmatprep.subr.bf16.mxu0 %v721
    %929 = vmatpush1.bf16.msra.mxu0 %v720
    %930 = vmatprep.subr.bf16.mxu0 %v729
    %931 = vmatpush1.bf16.msra.mxu0 %v728
    %932 = vmatprep.subr.bf16.mxu0 %v737
    %933 = vmatpush1.bf16.msra.mxu0 %v736
    %934 = vmatprep.subr.bf16.mxu0 %v745
    %935 = vmatpush1.bf16.msra.mxu0 %v744
    %936 = vmatprep.subr.bf16.mxu0 %v753
    %937 = vmatpush1.bf16.msra.mxu0 %v752
    %938 = vmatprep.subr.bf16.mxu0 %v761
    %939 = vmatpush1.bf16.msra.mxu0 %v760
    %940 = vmatprep.subr.bf16.mxu0 %v769
    %941 = vmatpush1.bf16.msra.mxu0 %v768
    %942 = vmatprep.subr.bf16.mxu0 %v777
    %943 = vmatpush1.bf16.msra.mxu0 %v776
    %944 = vmatprep.mubr.bf16.mxu0 %v269
    %945 = vmatmul.mubr.bf16.gmra.mrb[0].mxu0 %v268
    %v946 = vpop.f32.mrb[0].mxu0
    %v947 = vadd.f32 %v225, %v946
    %v948 = vpop.f32.mrb[0].mxu0
    %v949 = vadd.f32 %v229, %v948
    %v950 = vpop.f32.mrb[0].mxu0
    %v951 = vadd.f32 %v225, %v950
    %v952 = vpop.f32.mrb[0].mxu0
    %v953 = vadd.f32 %v229, %v952
    %954 = vdwg.mxu0
    %955 = vmatprep.subr.bf16.mxu0 %v659
    %956 = vmatpush1.bf16.msra.mxu0 %v658
    %957 = vmatprep.subr.bf16.mxu0 %v667
    %958 = vmatpush1.bf16.msra.mxu0 %v666
    %959 = vmatprep.subr.bf16.mxu0 %v675
    %960 = vmatpush1.bf16.msra.mxu0 %v674
    %961 = vmatprep.subr.bf16.mxu0 %v683
    %962 = vmatpush1.bf16.msra.mxu0 %v682
    %963 = vmatprep.subr.bf16.mxu0 %v691
    %964 = vmatpush1.bf16.msra.mxu0 %v690
    %965 = vmatprep.subr.bf16.mxu0 %v699
    %966 = vmatpush1.bf16.msra.mxu0 %v698
    %967 = vmatprep.subr.bf16.mxu0 %v707
    %968 = vmatpush1.bf16.msra.mxu0 %v706
    %969 = vmatprep.subr.bf16.mxu0 %v715
    %970 = vmatpush1.bf16.msra.mxu0 %v714
    %971 = vmatprep.subr.bf16.mxu0 %v723
    %972 = vmatpush1.bf16.msra.mxu0 %v722
    %973 = vmatprep.subr.bf16.mxu0 %v731
    %974 = vmatpush1.bf16.msra.mxu0 %v730
    %975 = vmatprep.subr.bf16.mxu0 %v739
    %976 = vmatpush1.bf16.msra.mxu0 %v738
    %977 = vmatprep.subr.bf16.mxu0 %v747
    %978 = vmatpush1.bf16.msra.mxu0 %v746
    %979 = vmatprep.subr.bf16.mxu0 %v755
    %980 = vmatpush1.bf16.msra.mxu0 %v754
    %981 = vmatprep.subr.bf16.mxu0 %v763
    %982 = vmatpush1.bf16.msra.mxu0 %v762
    %983 = vmatprep.subr.bf16.mxu0 %v771
    %984 = vmatpush1.bf16.msra.mxu0 %v770
    %985 = vmatprep.subr.bf16.mxu0 %v779
    %986 = vmatpush1.bf16.msra.mxu0 %v778
    %987 = vmatprep.mubr.bf16.mxu0 %v269
    %988 = vmatmul.mubr.bf16.gmra.mrb[0].mxu0 %v268
    %v989 = vpop.f32.mrb[0].mxu0
    %v990 = vadd.f32 %v233, %v989
    %v991 = vpop.f32.mrb[0].mxu0
    %v992 = vadd.f32 %v237, %v991
    %v993 = vpop.f32.mrb[0].mxu0
    %v994 = vadd.f32 %v233, %v993
    %v995 = vpop.f32.mrb[0].mxu0
    %v996 = vadd.f32 %v237, %v995
    %997 = vdwg.mxu0
    %998 = vmatprep.subr.bf16.mxu0 %v661
    %999 = vmatpush1.bf16.msra.mxu0 %v660
    %1000 = vmatprep.subr.bf16.mxu0 %v669
    %1001 = vmatpush1.bf16.msra.mxu0 %v668
    %1002 = vmatprep.subr.bf16.mxu0 %v677
    %1003 = vmatpush1.bf16.msra.mxu0 %v676
    %1004 = vmatprep.subr.bf16.mxu0 %v685
    %1005 = vmatpush1.bf16.msra.mxu0 %v684
    %1006 = vmatprep.subr.bf16.mxu0 %v693
    %1007 = vmatpush1.bf16.msra.mxu0 %v692
    %1008 = vmatprep.subr.bf16.mxu0 %v701
    %1009 = vmatpush1.bf16.msra.mxu0 %v700
    %1010 = vmatprep.subr.bf16.mxu0 %v709
    %1011 = vmatpush1.bf16.msra.mxu0 %v708
    %1012 = vmatprep.subr.bf16.mxu0 %v717
    %1013 = vmatpush1.bf16.msra.mxu0 %v716
    %1014 = vmatprep.subr.bf16.mxu0 %v725
    %1015 = vmatpush1.bf16.msra.mxu0 %v724
    %1016 = vmatprep.subr.bf16.mxu0 %v733
    %1017 = vmatpush1.bf16.msra.mxu0 %v732
    %1018 = vmatprep.subr.bf16.mxu0 %v741
    %1019 = vmatpush1.bf16.msra.mxu0 %v740
    %1020 = vmatprep.subr.bf16.mxu0 %v749
    %1021 = vmatpush1.bf16.msra.mxu0 %v748
    %1022 = vmatprep.subr.bf16.mxu0 %v757
    %1023 = vmatpush1.bf16.msra.mxu0 %v756
    %1024 = vmatprep.subr.bf16.mxu0 %v765
    %1025 = vmatpush1.bf16.msra.mxu0 %v764
    %1026 = vmatprep.subr.bf16.mxu0 %v773
    %1027 = vmatpush1.bf16.msra.mxu0 %v772
    %1028 = vmatprep.subr.bf16.mxu0 %v781
    %1029 = vmatpush1.bf16.msra.mxu0 %v780
    %1030 = vmatprep.mubr.bf16.mxu0 %v269
    %1031 = vmatmul.mubr.bf16.gmra.mrb[0].mxu0 %v268
    %v1032 = vpop.f32.mrb[0].mxu0
    %v1033 = vadd.f32 %v241, %v1032
    %v1034 = vpop.f32.mrb[0].mxu0
    %v1035 = vadd.f32 %v245, %v1034
    %v1036 = vpop.f32.mrb[0].mxu0
    %v1037 = vadd.f32 %v241, %v1036
    %v1038 = vpop.f32.mrb[0].mxu0
    %v1039 = vadd.f32 %v245, %v1038
    %1040 = vdwg.mxu0
    %1041 = vmatprep.subr.bf16.mxu0 %v663
    %1042 = vmatpush1.bf16.msra.mxu0 %v662
    %1043 = vmatprep.subr.bf16.mxu0 %v671
    %1044 = vmatpush1.bf16.msra.mxu0 %v670
    %1045 = vmatprep.subr.bf16.mxu0 %v679
    %1046 = vmatpush1.bf16.msra.mxu0 %v678
    %1047 = vmatprep.subr.bf16.mxu0 %v687
    %1048 = vmatpush1.bf16.msra.mxu0 %v686
    %1049 = vmatprep.subr.bf16.mxu0 %v695
    %1050 = vmatpush1.bf16.msra.mxu0 %v694
    %1051 = vmatprep.subr.bf16.mxu0 %v703
    %1052 = vmatpush1.bf16.msra.mxu0 %v702
    %1053 = vmatprep.subr.bf16.mxu0 %v711
    %1054 = vmatpush1.bf16.msra.mxu0 %v710
    %1055 = vmatprep.subr.bf16.mxu0 %v719
    %1056 = vmatpush1.bf16.msra.mxu0 %v718
    %1057 = vmatprep.subr.bf16.mxu0 %v727
    %1058 = vmatpush1.bf16.msra.mxu0 %v726
    %1059 = vmatprep.subr.bf16.mxu0 %v735
    %1060 = vmatpush1.bf16.msra.mxu0 %v734
    %1061 = vmatprep.subr.bf16.mxu0 %v743
    %1062 = vmatpush1.bf16.msra.mxu0 %v742
    %1063 = vmatprep.subr.bf16.mxu0 %v751
    %1064 = vmatpush1.bf16.msra.mxu0 %v750
    %1065 = vmatprep.subr.bf16.mxu0 %v759
    %1066 = vmatpush1.bf16.msra.mxu0 %v758
    %1067 = vmatprep.subr.bf16.mxu0 %v767
    %1068 = vmatpush1.bf16.msra.mxu0 %v766
    %1069 = vmatprep.subr.bf16.mxu0 %v775
    %1070 = vmatpush1.bf16.msra.mxu0 %v774
    %1071 = vmatprep.subr.bf16.mxu0 %v783
    %1072 = vmatpush1.bf16.msra.mxu0 %v782
    %1073 = vmatprep.mubr.bf16.mxu0 %v269
    %1074 = vmatmul.mubr.bf16.gmra.mrb[0].mxu0 %v268
    %v1075 = vpop.f32.mrb[0].mxu0
    %v1076 = vadd.f32 %v249, %v1075
    %v1077 = vpop.f32.mrb[0].mxu0
    %v1078 = vadd.f32 %v253, %v1077
    %v1079 = vpop.f32.mrb[0].mxu0
    %v1080 = vadd.f32 %v249, %v1079
    %v1081 = vpop.f32.mrb[0].mxu0
    %v1082 = vadd.f32 %v253, %v1081
    %1083 = vdwg.mxu0
    %v1084 = vmax.f32 %v947, 0.0
    %v1085 = vmax.f32 %v949, 0.0
    %v1086 = vmax.f32 %v990, 0.0
    %v1087 = vmax.f32 %v992, 0.0
    %v1088 = vmax.f32 %v1033, 0.0
    %v1089 = vmax.f32 %v1035, 0.0
    %v1090 = vmax.f32 %v1076, 0.0
    %v1091 = vmax.f32 %v1078, 0.0
    %v1092 = vmax.f32 %v951, 0.0
    %v1093 = vmax.f32 %v953, 0.0
    %v1094 = vmax.f32 %v994, 0.0
    %v1095 = vmax.f32 %v996, 0.0
    %v1096 = vmax.f32 %v1037, 0.0
    %v1097 = vmax.f32 %v1039, 0.0
    %v1098 = vmax.f32 %v1080, 0.0
    %v1099 = vmax.f32 %v1082, 0.0
    %v1100 = vpack.c.bf16 %v1092, %v1084
    %v1101 = vpack.c.bf16 %v1093, %v1085
    %v1102 = vpack.c.bf16 %v1094, %v1086
    %v1103 = vpack.c.bf16 %v1095, %v1087
    %v1104 = vpack.c.bf16 %v1096, %v1088
    %v1105 = vpack.c.bf16 %v1097, %v1089
    %v1106 = vpack.c.bf16 %v1098, %v1090
    %v1107 = vpack.c.bf16 %v1099, %v1091
    %v1108 = vld [vmem:[#allocation8] sm:$0xff]
    %v1109 = vld [vmem:[#allocation8 + $0x8] sm:$0xff]
    %v1110 = vld [vmem:[#allocation8 + $0x10] sm:$0xff]
    %v1111 = vld [vmem:[#allocation8 + $0x18] sm:$0xff]
    %v1112 = vld [vmem:[#allocation8 + $0x20] sm:$0xff]
    %v1113 = vld [vmem:[#allocation8 + $0x28] sm:$0xff]
    %v1114 = vld [vmem:[#allocation8 + $0x30] sm:$0xff]
    %v1115 = vld [vmem:[#allocation8 + $0x38] sm:$0xff]
    %v1116 = vld [vmem:[#allocation8 + $0x40] sm:$0xff]
    %v1117 = vld [vmem:[#allocation8 + $0x48] sm:$0xff]
    %v1118 = vld [vmem:[#allocation8 + $0x50] sm:$0xff]
    %v1119 = vld [vmem:[#allocation8 + $0x58] sm:$0xff]
    %v1120 = vld [vmem:[#allocation8 + $0x60] sm:$0xff]
    %v1121 = vld [vmem:[#allocation8 + $0x68] sm:$0xff]
    %v1122 = vld [vmem:[#allocation8 + $0x70] sm:$0xff]
    %v1123 = vld [vmem:[#allocation8 + $0x78] sm:$0xff]
    %v1124 = vld [vmem:[#allocation8 + $0x80] sm:$0xff]
    %v1125 = vld [vmem:[#allocation8 + $0x88] sm:$0xff]
    %v1126 = vld [vmem:[#allocation8 + $0x90] sm:$0xff]
    %v1127 = vld [vmem:[#allocation8 + $0x98] sm:$0xff]
    %v1128 = vld [vmem:[#allocation8 + $0xa0] sm:$0xff]
    %v1129 = vld [vmem:[#allocation8 + $0xa8] sm:$0xff]
    %v1130 = vld [vmem:[#allocation8 + $0xb0] sm:$0xff]
    %v1131 = vld [vmem:[#allocation8 + $0xb8] sm:$0xff]
    %v1132 = vld [vmem:[#allocation8 + $0xc0] sm:$0xff]
    %v1133 = vld [vmem:[#allocation8 + $0xc8] sm:$0xff]
    %v1134 = vld [vmem:[#allocation8 + $0xd0] sm:$0xff]
    %v1135 = vld [vmem:[#allocation8 + $0xd8] sm:$0xff]
    %v1136 = vld [vmem:[#allocation8 + $0xe0] sm:$0xff]
    %v1137 = vld [vmem:[#allocation8 + $0xe8] sm:$0xff]
    %v1138 = vld [vmem:[#allocation8 + $0xf0] sm:$0xff]
    %v1139 = vld [vmem:[#allocation8 + $0xf8] sm:$0xff]
    %v1140 = vld [vmem:[#allocation8 + $0x100] sm:$0xff]
    %v1141 = vld [vmem:[#allocation8 + $0x108] sm:$0xff]
    %v1142 = vld [vmem:[#allocation8 + $0x110] sm:$0xff]
    %v1143 = vld [vmem:[#allocation8 + $0x118] sm:$0xff]
    %v1144 = vld [vmem:[#allocation8 + $0x120] sm:$0xff]
    %v1145 = vld [vmem:[#allocation8 + $0x128] sm:$0xff]
    %v1146 = vld [vmem:[#allocation8 + $0x130] sm:$0xff]
    %v1147 = vld [vmem:[#allocation8 + $0x138] sm:$0xff]
    %v1148 = vld [vmem:[#allocation8 + $0x140] sm:$0xff]
    %v1149 = vld [vmem:[#allocation8 + $0x148] sm:$0xff]
    %v1150 = vld [vmem:[#allocation8 + $0x150] sm:$0xff]
    %v1151 = vld [vmem:[#allocation8 + $0x158] sm:$0xff]
    %v1152 = vld [vmem:[#allocation8 + $0x160] sm:$0xff]
    %v1153 = vld [vmem:[#allocation8 + $0x168] sm:$0xff]
    %v1154 = vld [vmem:[#allocation8 + $0x170] sm:$0xff]
    %v1155 = vld [vmem:[#allocation8 + $0x178] sm:$0xff]
    %v1156 = vld [vmem:[#allocation8 + $0x180] sm:$0xff]
    %v1157 = vld [vmem:[#allocation8 + $0x188] sm:$0xff]
    %v1158 = vld [vmem:[#allocation8 + $0x190] sm:$0xff]
    %v1159 = vld [vmem:[#allocation8 + $0x198] sm:$0xff]
    %v1160 = vld [vmem:[#allocation8 + $0x1a0] sm:$0xff]
    %v1161 = vld [vmem:[#allocation8 + $0x1a8] sm:$0xff]
    %v1162 = vld [vmem:[#allocation8 + $0x1b0] sm:$0xff]
    %v1163 = vld [vmem:[#allocation8 + $0x1b8] sm:$0xff]
    %v1164 = vld [vmem:[#allocation8 + $0x1c0] sm:$0xff]
    %v1165 = vld [vmem:[#allocation8 + $0x1c8] sm:$0xff]
    %v1166 = vld [vmem:[#allocation8 + $0x1d0] sm:$0xff]
    %v1167 = vld [vmem:[#allocation8 + $0x1d8] sm:$0xff]
    %v1168 = vld [vmem:[#allocation8 + $0x1e0] sm:$0xff]
    %v1169 = vld [vmem:[#allocation8 + $0x1e8] sm:$0xff]
    %v1170 = vld [vmem:[#allocation8 + $0x1f0] sm:$0xff]
    %v1171 = vld [vmem:[#allocation8 + $0x1f8] sm:$0xff]
    %v1172 = vld [vmem:[#allocation8 + $0x200] sm:$0xff]
    %v1173 = vld [vmem:[#allocation8 + $0x208] sm:$0xff]
    %v1174 = vld [vmem:[#allocation8 + $0x210] sm:$0xff]
    %v1175 = vld [vmem:[#allocation8 + $0x218] sm:$0xff]
    %v1176 = vld [vmem:[#allocation8 + $0x220] sm:$0xff]
    %v1177 = vld [vmem:[#allocation8 + $0x228] sm:$0xff]
    %v1178 = vld [vmem:[#allocation8 + $0x230] sm:$0xff]
    %v1179 = vld [vmem:[#allocation8 + $0x238] sm:$0xff]
    %v1180 = vld [vmem:[#allocation8 + $0x240] sm:$0xff]
    %v1181 = vld [vmem:[#allocation8 + $0x248] sm:$0xff]
    %v1182 = vld [vmem:[#allocation8 + $0x250] sm:$0xff]
    %v1183 = vld [vmem:[#allocation8 + $0x258] sm:$0xff]
    %v1184 = vld [vmem:[#allocation8 + $0x260] sm:$0xff]
    %v1185 = vld [vmem:[#allocation8 + $0x268] sm:$0xff]
    %v1186 = vld [vmem:[#allocation8 + $0x270] sm:$0xff]
    %v1187 = vld [vmem:[#allocation8 + $0x278] sm:$0xff]
    %v1188 = vld [vmem:[#allocation8 + $0x280] sm:$0xff]
    %v1189 = vld [vmem:[#allocation8 + $0x288] sm:$0xff]
    %v1190 = vld [vmem:[#allocation8 + $0x290] sm:$0xff]
    %v1191 = vld [vmem:[#allocation8 + $0x298] sm:$0xff]
    %v1192 = vld [vmem:[#allocation8 + $0x2a0] sm:$0xff]
    %v1193 = vld [vmem:[#allocation8 + $0x2a8] sm:$0xff]
    %v1194 = vld [vmem:[#allocation8 + $0x2b0] sm:$0xff]
    %v1195 = vld [vmem:[#allocation8 + $0x2b8] sm:$0xff]
    %v1196 = vld [vmem:[#allocation8 + $0x2c0] sm:$0xff]
    %v1197 = vld [vmem:[#allocation8 + $0x2c8] sm:$0xff]
    %v1198 = vld [vmem:[#allocation8 + $0x2d0] sm:$0xff]
    %v1199 = vld [vmem:[#allocation8 + $0x2d8] sm:$0xff]
    %v1200 = vld [vmem:[#allocation8 + $0x2e0] sm:$0xff]
    %v1201 = vld [vmem:[#allocation8 + $0x2e8] sm:$0xff]
    %v1202 = vld [vmem:[#allocation8 + $0x2f0] sm:$0xff]
    %v1203 = vld [vmem:[#allocation8 + $0x2f8] sm:$0xff]
    %v1204 = vld [vmem:[#allocation8 + $0x300] sm:$0xff]
    %v1205 = vld [vmem:[#allocation8 + $0x308] sm:$0xff]
    %v1206 = vld [vmem:[#allocation8 + $0x310] sm:$0xff]
    %v1207 = vld [vmem:[#allocation8 + $0x318] sm:$0xff]
    %v1208 = vld [vmem:[#allocation8 + $0x320] sm:$0xff]
    %v1209 = vld [vmem:[#allocation8 + $0x328] sm:$0xff]
    %v1210 = vld [vmem:[#allocation8 + $0x330] sm:$0xff]
    %v1211 = vld [vmem:[#allocation8 + $0x338] sm:$0xff]
    %v1212 = vld [vmem:[#allocation8 + $0x340] sm:$0xff]
    %v1213 = vld [vmem:[#allocation8 + $0x348] sm:$0xff]
    %v1214 = vld [vmem:[#allocation8 + $0x350] sm:$0xff]
    %v1215 = vld [vmem:[#allocation8 + $0x358] sm:$0xff]
    %v1216 = vld [vmem:[#allocation8 + $0x360] sm:$0xff]
    %v1217 = vld [vmem:[#allocation8 + $0x368] sm:$0xff]
    %v1218 = vld [vmem:[#allocation8 + $0x370] sm:$0xff]
    %v1219 = vld [vmem:[#allocation8 + $0x378] sm:$0xff]
    %v1220 = vld [vmem:[#allocation8 + $0x380] sm:$0xff]
    %v1221 = vld [vmem:[#allocation8 + $0x388] sm:$0xff]
    %v1222 = vld [vmem:[#allocation8 + $0x390] sm:$0xff]
    %v1223 = vld [vmem:[#allocation8 + $0x398] sm:$0xff]
    %v1224 = vld [vmem:[#allocation8 + $0x3a0] sm:$0xff]
    %v1225 = vld [vmem:[#allocation8 + $0x3a8] sm:$0xff]
    %v1226 = vld [vmem:[#allocation8 + $0x3b0] sm:$0xff]
    %v1227 = vld [vmem:[#allocation8 + $0x3b8] sm:$0xff]
    %v1228 = vld [vmem:[#allocation8 + $0x3c0] sm:$0xff]
    %v1229 = vld [vmem:[#allocation8 + $0x3c8] sm:$0xff]
    %v1230 = vld [vmem:[#allocation8 + $0x3d0] sm:$0xff]
    %v1231 = vld [vmem:[#allocation8 + $0x3d8] sm:$0xff]
    %v1232 = vld [vmem:[#allocation8 + $0x3e0] sm:$0xff]
    %v1233 = vld [vmem:[#allocation8 + $0x3e8] sm:$0xff]
    %v1234 = vld [vmem:[#allocation8 + $0x3f0] sm:$0xff]
    %v1235 = vld [vmem:[#allocation8 + $0x3f8] sm:$0xff]
    %v1236 = vld [vmem:[%s4] sm:$0x3]
    %v1238 = vlaneseq
    %v1239 = vshrl.u32 %v1238, 7
    %v1240 = vsub.s32 0, %v1239
    %v1241 = vrot.slane %v1236, %v1240
    %v1242 = vlaneseq
    %v1243 = vshrl.u32 %v1242, 7
    %v1244 = vsub.s32 1, %v1243
    %v1245 = vrot.slane %v1236, %v1244
    %v1376 = vunpack.c.l.b16 %v1108
    %v1377 = vunpack.c.h.b16 %v1108
    %v1378 = vunpack.c.l.b16 %v1109
    %v1379 = vunpack.c.h.b16 %v1109
    %v1380 = vunpack.c.l.b16 %v1110
    %v1381 = vunpack.c.h.b16 %v1110
    %v1382 = vunpack.c.l.b16 %v1111
    %v1383 = vunpack.c.h.b16 %v1111
    %v1384 = vunpack.c.l.b16 %v1112
    %v1385 = vunpack.c.h.b16 %v1112
    %v1386 = vunpack.c.l.b16 %v1113
    %v1387 = vunpack.c.h.b16 %v1113
    %v1388 = vunpack.c.l.b16 %v1114
    %v1389 = vunpack.c.h.b16 %v1114
    %v1390 = vunpack.c.l.b16 %v1115
    %v1391 = vunpack.c.h.b16 %v1115
    %v1392 = vunpack.c.l.b16 %v1116
    %v1393 = vunpack.c.h.b16 %v1116
    %v1394 = vunpack.c.l.b16 %v1117
    %v1395 = vunpack.c.h.b16 %v1117
    %v1396 = vunpack.c.l.b16 %v1118
    %v1397 = vunpack.c.h.b16 %v1118
    %v1398 = vunpack.c.l.b16 %v1119
    %v1399 = vunpack.c.h.b16 %v1119
    %v1400 = vunpack.c.l.b16 %v1120
    %v1401 = vunpack.c.h.b16 %v1120
    %v1402 = vunpack.c.l.b16 %v1121
    %v1403 = vunpack.c.h.b16 %v1121
    %v1404 = vunpack.c.l.b16 %v1122
    %v1405 = vunpack.c.h.b16 %v1122
    %v1406 = vunpack.c.l.b16 %v1123
    %v1407 = vunpack.c.h.b16 %v1123
    %v1408 = vunpack.c.l.b16 %v1124
    %v1409 = vunpack.c.h.b16 %v1124
    %v1410 = vunpack.c.l.b16 %v1125
    %v1411 = vunpack.c.h.b16 %v1125
    %v1412 = vunpack.c.l.b16 %v1126
    %v1413 = vunpack.c.h.b16 %v1126
    %v1414 = vunpack.c.l.b16 %v1127
    %v1415 = vunpack.c.h.b16 %v1127
    %v1416 = vunpack.c.l.b16 %v1128
    %v1417 = vunpack.c.h.b16 %v1128
    %v1418 = vunpack.c.l.b16 %v1129
    %v1419 = vunpack.c.h.b16 %v1129
    %v1420 = vunpack.c.l.b16 %v1130
    %v1421 = vunpack.c.h.b16 %v1130
    %v1422 = vunpack.c.l.b16 %v1131
    %v1423 = vunpack.c.h.b16 %v1131
    %v1424 = vunpack.c.l.b16 %v1132
    %v1425 = vunpack.c.h.b16 %v1132
    %v1426 = vunpack.c.l.b16 %v1133
    %v1427 = vunpack.c.h.b16 %v1133
    %v1428 = vunpack.c.l.b16 %v1134
    %v1429 = vunpack.c.h.b16 %v1134
    %v1430 = vunpack.c.l.b16 %v1135
    %v1431 = vunpack.c.h.b16 %v1135
    %v1432 = vunpack.c.l.b16 %v1136
    %v1433 = vunpack.c.h.b16 %v1136
    %v1434 = vunpack.c.l.b16 %v1137
    %v1435 = vunpack.c.h.b16 %v1137
    %v1436 = vunpack.c.l.b16 %v1138
    %v1437 = vunpack.c.h.b16 %v1138
    %v1438 = vunpack.c.l.b16 %v1139
    %v1439 = vunpack.c.h.b16 %v1139
    %v1440 = vunpack.c.l.b16 %v1140
    %v1441 = vunpack.c.h.b16 %v1140
    %v1442 = vunpack.c.l.b16 %v1141
    %v1443 = vunpack.c.h.b16 %v1141
    %v1444 = vunpack.c.l.b16 %v1142
    %v1445 = vunpack.c.h.b16 %v1142
    %v1446 = vunpack.c.l.b16 %v1143
    %v1447 = vunpack.c.h.b16 %v1143
    %v1448 = vunpack.c.l.b16 %v1144
    %v1449 = vunpack.c.h.b16 %v1144
    %v1450 = vunpack.c.l.b16 %v1145
    %v1451 = vunpack.c.h.b16 %v1145
    %v1452 = vunpack.c.l.b16 %v1146
    %v1453 = vunpack.c.h.b16 %v1146
    %v1454 = vunpack.c.l.b16 %v1147
    %v1455 = vunpack.c.h.b16 %v1147
    %v1456 = vunpack.c.l.b16 %v1148
    %v1457 = vunpack.c.h.b16 %v1148
    %v1458 = vunpack.c.l.b16 %v1149
    %v1459 = vunpack.c.h.b16 %v1149
    %v1460 = vunpack.c.l.b16 %v1150
    %v1461 = vunpack.c.h.b16 %v1150
    %v1462 = vunpack.c.l.b16 %v1151
    %v1463 = vunpack.c.h.b16 %v1151
    %v1464 = vunpack.c.l.b16 %v1152
    %v1465 = vunpack.c.h.b16 %v1152
    %v1466 = vunpack.c.l.b16 %v1153
    %v1467 = vunpack.c.h.b16 %v1153
    %v1468 = vunpack.c.l.b16 %v1154
    %v1469 = vunpack.c.h.b16 %v1154
    %v1470 = vunpack.c.l.b16 %v1155
    %v1471 = vunpack.c.h.b16 %v1155
    %v1472 = vunpack.c.l.b16 %v1156
    %v1473 = vunpack.c.h.b16 %v1156
    %v1474 = vunpack.c.l.b16 %v1157
    %v1475 = vunpack.c.h.b16 %v1157
    %v1476 = vunpack.c.l.b16 %v1158
    %v1477 = vunpack.c.h.b16 %v1158
    %v1478 = vunpack.c.l.b16 %v1159
    %v1479 = vunpack.c.h.b16 %v1159
    %v1480 = vunpack.c.l.b16 %v1160
    %v1481 = vunpack.c.h.b16 %v1160
    %v1482 = vunpack.c.l.b16 %v1161
    %v1483 = vunpack.c.h.b16 %v1161
    %v1484 = vunpack.c.l.b16 %v1162
    %v1485 = vunpack.c.h.b16 %v1162
    %v1486 = vunpack.c.l.b16 %v1163
    %v1487 = vunpack.c.h.b16 %v1163
    %v1488 = vunpack.c.l.b16 %v1164
    %v1489 = vunpack.c.h.b16 %v1164
    %v1490 = vunpack.c.l.b16 %v1165
    %v1491 = vunpack.c.h.b16 %v1165
    %v1492 = vunpack.c.l.b16 %v1166
    %v1493 = vunpack.c.h.b16 %v1166
    %v1494 = vunpack.c.l.b16 %v1167
    %v1495 = vunpack.c.h.b16 %v1167
    %v1496 = vunpack.c.l.b16 %v1168
    %v1497 = vunpack.c.h.b16 %v1168
    %v1498 = vunpack.c.l.b16 %v1169
    %v1499 = vunpack.c.h.b16 %v1169
    %v1500 = vunpack.c.l.b16 %v1170
    %v1501 = vunpack.c.h.b16 %v1170
    %v1502 = vunpack.c.l.b16 %v1171
    %v1503 = vunpack.c.h.b16 %v1171
    %v1504 = vunpack.c.l.b16 %v1172
    %v1505 = vunpack.c.h.b16 %v1172
    %v1506 = vunpack.c.l.b16 %v1173
    %v1507 = vunpack.c.h.b16 %v1173
    %v1508 = vunpack.c.l.b16 %v1174
    %v1509 = vunpack.c.h.b16 %v1174
    %v1510 = vunpack.c.l.b16 %v1175
    %v1511 = vunpack.c.h.b16 %v1175
    %v1512 = vunpack.c.l.b16 %v1176
    %v1513 = vunpack.c.h.b16 %v1176
    %v1514 = vunpack.c.l.b16 %v1177
    %v1515 = vunpack.c.h.b16 %v1177
    %v1516 = vunpack.c.l.b16 %v1178
    %v1517 = vunpack.c.h.b16 %v1178
    %v1518 = vunpack.c.l.b16 %v1179
    %v1519 = vunpack.c.h.b16 %v1179
    %v1520 = vunpack.c.l.b16 %v1180
    %v1521 = vunpack.c.h.b16 %v1180
    %v1522 = vunpack.c.l.b16 %v1181
    %v1523 = vunpack.c.h.b16 %v1181
    %v1524 = vunpack.c.l.b16 %v1182
    %v1525 = vunpack.c.h.b16 %v1182
    %v1526 = vunpack.c.l.b16 %v1183
    %v1527 = vunpack.c.h.b16 %v1183
    %v1528 = vunpack.c.l.b16 %v1184
    %v1529 = vunpack.c.h.b16 %v1184
    %v1530 = vunpack.c.l.b16 %v1185
    %v1531 = vunpack.c.h.b16 %v1185
    %v1532 = vunpack.c.l.b16 %v1186
    %v1533 = vunpack.c.h.b16 %v1186
    %v1534 = vunpack.c.l.b16 %v1187
    %v1535 = vunpack.c.h.b16 %v1187
    %v1536 = vunpack.c.l.b16 %v1188
    %v1537 = vunpack.c.h.b16 %v1188
    %v1538 = vunpack.c.l.b16 %v1189
    %v1539 = vunpack.c.h.b16 %v1189
    %v1540 = vunpack.c.l.b16 %v1190
    %v1541 = vunpack.c.h.b16 %v1190
    %v1542 = vunpack.c.l.b16 %v1191
    %v1543 = vunpack.c.h.b16 %v1191
    %v1544 = vunpack.c.l.b16 %v1192
    %v1545 = vunpack.c.h.b16 %v1192
    %v1546 = vunpack.c.l.b16 %v1193
    %v1547 = vunpack.c.h.b16 %v1193
    %v1548 = vunpack.c.l.b16 %v1194
    %v1549 = vunpack.c.h.b16 %v1194
    %v1550 = vunpack.c.l.b16 %v1195
    %v1551 = vunpack.c.h.b16 %v1195
    %v1552 = vunpack.c.l.b16 %v1196
    %v1553 = vunpack.c.h.b16 %v1196
    %v1554 = vunpack.c.l.b16 %v1197
    %v1555 = vunpack.c.h.b16 %v1197
    %v1556 = vunpack.c.l.b16 %v1198
    %v1557 = vunpack.c.h.b16 %v1198
    %v1558 = vunpack.c.l.b16 %v1199
    %v1559 = vunpack.c.h.b16 %v1199
    %v1560 = vunpack.c.l.b16 %v1200
    %v1561 = vunpack.c.h.b16 %v1200
    %v1562 = vunpack.c.l.b16 %v1201
    %v1563 = vunpack.c.h.b16 %v1201
    %v1564 = vunpack.c.l.b16 %v1202
    %v1565 = vunpack.c.h.b16 %v1202
    %v1566 = vunpack.c.l.b16 %v1203
    %v1567 = vunpack.c.h.b16 %v1203
    %v1568 = vunpack.c.l.b16 %v1204
    %v1569 = vunpack.c.h.b16 %v1204
    %v1570 = vunpack.c.l.b16 %v1205
    %v1571 = vunpack.c.h.b16 %v1205
    %v1572 = vunpack.c.l.b16 %v1206
    %v1573 = vunpack.c.h.b16 %v1206
    %v1574 = vunpack.c.l.b16 %v1207
    %v1575 = vunpack.c.h.b16 %v1207
    %v1576 = vunpack.c.l.b16 %v1208
    %v1577 = vunpack.c.h.b16 %v1208
    %v1578 = vunpack.c.l.b16 %v1209
    %v1579 = vunpack.c.h.b16 %v1209
    %v1580 = vunpack.c.l.b16 %v1210
    %v1581 = vunpack.c.h.b16 %v1210
    %v1582 = vunpack.c.l.b16 %v1211
    %v1583 = vunpack.c.h.b16 %v1211
    %v1584 = vunpack.c.l.b16 %v1212
    %v1585 = vunpack.c.h.b16 %v1212
    %v1586 = vunpack.c.l.b16 %v1213
    %v1587 = vunpack.c.h.b16 %v1213
    %v1588 = vunpack.c.l.b16 %v1214
    %v1589 = vunpack.c.h.b16 %v1214
    %v1590 = vunpack.c.l.b16 %v1215
    %v1591 = vunpack.c.h.b16 %v1215
    %v1592 = vunpack.c.l.b16 %v1216
    %v1593 = vunpack.c.h.b16 %v1216
    %v1594 = vunpack.c.l.b16 %v1217
    %v1595 = vunpack.c.h.b16 %v1217
    %v1596 = vunpack.c.l.b16 %v1218
    %v1597 = vunpack.c.h.b16 %v1218
    %v1598 = vunpack.c.l.b16 %v1219
    %v1599 = vunpack.c.h.b16 %v1219
    %v1600 = vunpack.c.l.b16 %v1220
    %v1601 = vunpack.c.h.b16 %v1220
    %v1602 = vunpack.c.l.b16 %v1221
    %v1603 = vunpack.c.h.b16 %v1221
    %v1604 = vunpack.c.l.b16 %v1222
    %v1605 = vunpack.c.h.b16 %v1222
    %v1606 = vunpack.c.l.b16 %v1223
    %v1607 = vunpack.c.h.b16 %v1223
    %v1608 = vunpack.c.l.b16 %v1224
    %v1609 = vunpack.c.h.b16 %v1224
    %v1610 = vunpack.c.l.b16 %v1225
    %v1611 = vunpack.c.h.b16 %v1225
    %v1612 = vunpack.c.l.b16 %v1226
    %v1613 = vunpack.c.h.b16 %v1226
    %v1614 = vunpack.c.l.b16 %v1227
    %v1615 = vunpack.c.h.b16 %v1227
    %v1616 = vunpack.c.l.b16 %v1228
    %v1617 = vunpack.c.h.b16 %v1228
    %v1618 = vunpack.c.l.b16 %v1229
    %v1619 = vunpack.c.h.b16 %v1229
    %v1620 = vunpack.c.l.b16 %v1230
    %v1621 = vunpack.c.h.b16 %v1230
    %v1622 = vunpack.c.l.b16 %v1231
    %v1623 = vunpack.c.h.b16 %v1231
    %v1624 = vunpack.c.l.b16 %v1232
    %v1625 = vunpack.c.h.b16 %v1232
    %v1626 = vunpack.c.l.b16 %v1233
    %v1627 = vunpack.c.h.b16 %v1233
    %v1628 = vunpack.c.l.b16 %v1234
    %v1629 = vunpack.c.h.b16 %v1234
    %v1630 = vunpack.c.l.b16 %v1235
    %v1631 = vunpack.c.h.b16 %v1235
    %v1632 = vpack.c.b16 %v1378, %v1376
    %v1633 = vpack.c.b16 %v1379, %v1377
    %v1634 = vpack.c.b16 %v1382, %v1380
    %v1635 = vpack.c.b16 %v1383, %v1381
    %v1636 = vpack.c.b16 %v1386, %v1384
    %v1637 = vpack.c.b16 %v1387, %v1385
    %v1638 = vpack.c.b16 %v1390, %v1388
    %v1639 = vpack.c.b16 %v1391, %v1389
    %v1640 = vpack.c.b16 %v1394, %v1392
    %v1641 = vpack.c.b16 %v1395, %v1393
    %v1642 = vpack.c.b16 %v1398, %v1396
    %v1643 = vpack.c.b16 %v1399, %v1397
    %v1644 = vpack.c.b16 %v1402, %v1400
    %v1645 = vpack.c.b16 %v1403, %v1401
    %v1646 = vpack.c.b16 %v1406, %v1404
    %v1647 = vpack.c.b16 %v1407, %v1405
    %v1648 = vpack.c.b16 %v1410, %v1408
    %v1649 = vpack.c.b16 %v1411, %v1409
    %v1650 = vpack.c.b16 %v1414, %v1412
    %v1651 = vpack.c.b16 %v1415, %v1413
    %v1652 = vpack.c.b16 %v1418, %v1416
    %v1653 = vpack.c.b16 %v1419, %v1417
    %v1654 = vpack.c.b16 %v1422, %v1420
    %v1655 = vpack.c.b16 %v1423, %v1421
    %v1656 = vpack.c.b16 %v1426, %v1424
    %v1657 = vpack.c.b16 %v1427, %v1425
    %v1658 = vpack.c.b16 %v1430, %v1428
    %v1659 = vpack.c.b16 %v1431, %v1429
    %v1660 = vpack.c.b16 %v1434, %v1432
    %v1661 = vpack.c.b16 %v1435, %v1433
    %v1662 = vpack.c.b16 %v1438, %v1436
    %v1663 = vpack.c.b16 %v1439, %v1437
    %v1664 = vpack.c.b16 %v1442, %v1440
    %v1665 = vpack.c.b16 %v1443, %v1441
    %v1666 = vpack.c.b16 %v1446, %v1444
    %v1667 = vpack.c.b16 %v1447, %v1445
    %v1668 = vpack.c.b16 %v1450, %v1448
    %v1669 = vpack.c.b16 %v1451, %v1449
    %v1670 = vpack.c.b16 %v1454, %v1452
    %v1671 = vpack.c.b16 %v1455, %v1453
    %v1672 = vpack.c.b16 %v1458, %v1456
    %v1673 = vpack.c.b16 %v1459, %v1457
    %v1674 = vpack.c.b16 %v1462, %v1460
    %v1675 = vpack.c.b16 %v1463, %v1461
    %v1676 = vpack.c.b16 %v1466, %v1464
    %v1677 = vpack.c.b16 %v1467, %v1465
    %v1678 = vpack.c.b16 %v1470, %v1468
    %v1679 = vpack.c.b16 %v1471, %v1469
    %v1680 = vpack.c.b16 %v1474, %v1472
    %v1681 = vpack.c.b16 %v1475, %v1473
    %v1682 = vpack.c.b16 %v1478, %v1476
    %v1683 = vpack.c.b16 %v1479, %v1477
    %v1684 = vpack.c.b16 %v1482, %v1480
    %v1685 = vpack.c.b16 %v1483, %v1481
    %v1686 = vpack.c.b16 %v1486, %v1484
    %v1687 = vpack.c.b16 %v1487, %v1485
    %v1688 = vpack.c.b16 %v1490, %v1488
    %v1689 = vpack.c.b16 %v1491, %v1489
    %v1690 = vpack.c.b16 %v1494, %v1492
    %v1691 = vpack.c.b16 %v1495, %v1493
    %v1692 = vpack.c.b16 %v1498, %v1496
    %v1693 = vpack.c.b16 %v1499, %v1497
    %v1694 = vpack.c.b16 %v1502, %v1500
    %v1695 = vpack.c.b16 %v1503, %v1501
    %v1696 = vpack.c.b16 %v1506, %v1504
    %v1697 = vpack.c.b16 %v1507, %v1505
    %v1698 = vpack.c.b16 %v1510, %v1508
    %v1699 = vpack.c.b16 %v1511, %v1509
    %v1700 = vpack.c.b16 %v1514, %v1512
    %v1701 = vpack.c.b16 %v1515, %v1513
    %v1702 = vpack.c.b16 %v1518, %v1516
    %v1703 = vpack.c.b16 %v1519, %v1517
    %v1704 = vpack.c.b16 %v1522, %v1520
    %v1705 = vpack.c.b16 %v1523, %v1521
    %v1706 = vpack.c.b16 %v1526, %v1524
    %v1707 = vpack.c.b16 %v1527, %v1525
    %v1708 = vpack.c.b16 %v1530, %v1528
    %v1709 = vpack.c.b16 %v1531, %v1529
    %v1710 = vpack.c.b16 %v1534, %v1532
    %v1711 = vpack.c.b16 %v1535, %v1533
    %v1712 = vpack.c.b16 %v1538, %v1536
    %v1713 = vpack.c.b16 %v1539, %v1537
    %v1714 = vpack.c.b16 %v1542, %v1540
    %v1715 = vpack.c.b16 %v1543, %v1541
    %v1716 = vpack.c.b16 %v1546, %v1544
    %v1717 = vpack.c.b16 %v1547, %v1545
    %v1718 = vpack.c.b16 %v1550, %v1548
    %v1719 = vpack.c.b16 %v1551, %v1549
    %v1720 = vpack.c.b16 %v1554, %v1552
    %v1721 = vpack.c.b16 %v1555, %v1553
    %v1722 = vpack.c.b16 %v1558, %v1556
    %v1723 = vpack.c.b16 %v1559, %v1557
    %v1724 = vpack.c.b16 %v1562, %v1560
    %v1725 = vpack.c.b16 %v1563, %v1561
    %v1726 = vpack.c.b16 %v1566, %v1564
    %v1727 = vpack.c.b16 %v1567, %v1565
    %v1728 = vpack.c.b16 %v1570, %v1568
    %v1729 = vpack.c.b16 %v1571, %v1569
    %v1730 = vpack.c.b16 %v1574, %v1572
    %v1731 = vpack.c.b16 %v1575, %v1573
    %v1732 = vpack.c.b16 %v1578, %v1576
    %v1733 = vpack.c.b16 %v1579, %v1577
    %v1734 = vpack.c.b16 %v1582, %v1580
    %v1735 = vpack.c.b16 %v1583, %v1581
    %v1736 = vpack.c.b16 %v1586, %v1584
    %v1737 = vpack.c.b16 %v1587, %v1585
    %v1738 = vpack.c.b16 %v1590, %v1588
    %v1739 = vpack.c.b16 %v1591, %v1589
    %v1740 = vpack.c.b16 %v1594, %v1592
    %v1741 = vpack.c.b16 %v1595, %v1593
    %v1742 = vpack.c.b16 %v1598, %v1596
    %v1743 = vpack.c.b16 %v1599, %v1597
    %v1744 = vpack.c.b16 %v1602, %v1600
    %v1745 = vpack.c.b16 %v1603, %v1601
    %v1746 = vpack.c.b16 %v1606, %v1604
    %v1747 = vpack.c.b16 %v1607, %v1605
    %v1748 = vpack.c.b16 %v1610, %v1608
    %v1749 = vpack.c.b16 %v1611, %v1609
    %v1750 = vpack.c.b16 %v1614, %v1612
    %v1751 = vpack.c.b16 %v1615, %v1613
    %v1752 = vpack.c.b16 %v1618, %v1616
    %v1753 = vpack.c.b16 %v1619, %v1617
    %v1754 = vpack.c.b16 %v1622, %v1620
    %v1755 = vpack.c.b16 %v1623, %v1621
    %v1756 = vpack.c.b16 %v1626, %v1624
    %v1757 = vpack.c.b16 %v1627, %v1625
    %v1758 = vpack.c.b16 %v1630, %v1628
    %v1759 = vpack.c.b16 %v1631, %v1629
    %1888 = vmatprep.subr.bf16.mxu0 %v1633
    %1889 = vmatpush1.bf16.msra.mxu0 %v1632
    %1890 = vmatprep.subr.bf16.mxu0 %v1635
    %1891 = vmatpush1.bf16.msra.mxu0 %v1634
    %1892 = vmatprep.subr.bf16.mxu0 %v1637
    %1893 = vmatpush1.bf16.msra.mxu0 %v1636
    %1894 = vmatprep.subr.bf16.mxu0 %v1639
    %1895 = vmatpush1.bf16.msra.mxu0 %v1638
    %1896 = vmatprep.subr.bf16.mxu0 %v1641
    %1897 = vmatpush1.bf16.msra.mxu0 %v1640
    %1898 = vmatprep.subr.bf16.mxu0 %v1643
    %1899 = vmatpush1.bf16.msra.mxu0 %v1642
    %1900 = vmatprep.subr.bf16.mxu0 %v1645
    %1901 = vmatpush1.bf16.msra.mxu0 %v1644
    %1902 = vmatprep.subr.bf16.mxu0 %v1647
    %1903 = vmatpush1.bf16.msra.mxu0 %v1646
    %1904 = vmatprep.subr.bf16.mxu0 %v1649
    %1905 = vmatpush1.bf16.msra.mxu0 %v1648
    %1906 = vmatprep.subr.bf16.mxu0 %v1651
    %1907 = vmatpush1.bf16.msra.mxu0 %v1650
    %1908 = vmatprep.subr.bf16.mxu0 %v1653
    %1909 = vmatpush1.bf16.msra.mxu0 %v1652
    %1910 = vmatprep.subr.bf16.mxu0 %v1655
    %1911 = vmatpush1.bf16.msra.mxu0 %v1654
    %1912 = vmatprep.subr.bf16.mxu0 %v1657
    %1913 = vmatpush1.bf16.msra.mxu0 %v1656
    %1914 = vmatprep.subr.bf16.mxu0 %v1659
    %1915 = vmatpush1.bf16.msra.mxu0 %v1658
    %1916 = vmatprep.subr.bf16.mxu0 %v1661
    %1917 = vmatpush1.bf16.msra.mxu0 %v1660
    %1918 = vmatprep.subr.bf16.mxu0 %v1663
    %1919 = vmatpush1.bf16.msra.mxu0 %v1662
    %1920 = vmatprep.mubr.bf16.mxu0 %v1101
    %1921 = vmatmul.mubr.bf16.gmra.mrb[0].mxu0 %v1100
    %v1922 = vpop.f32.mrb[0].mxu0
    %v1923 = vadd.f32 %v1241, %v1922
    %v1924 = vpop.f32.mrb[0].mxu0
    %v1925 = vadd.f32 %v1245, %v1924
    %v1926 = vpop.f32.mrb[0].mxu0
    %v1927 = vadd.f32 %v1241, %v1926
    %v1928 = vpop.f32.mrb[0].mxu0
    %v1929 = vadd.f32 %v1245, %v1928
    %1930 = vdwg.mxu0
    %1931 = vmatprep.subr.bf16.mxu0 %v1665
    %1932 = vmatpush1.bf16.msra.mxu0 %v1664
    %1933 = vmatprep.subr.bf16.mxu0 %v1667
    %1934 = vmatpush1.bf16.msra.mxu0 %v1666
    %1935 = vmatprep.subr.bf16.mxu0 %v1669
    %1936 = vmatpush1.bf16.msra.mxu0 %v1668
    %1937 = vmatprep.subr.bf16.mxu0 %v1671
    %1938 = vmatpush1.bf16.msra.mxu0 %v1670
    %1939 = vmatprep.subr.bf16.mxu0 %v1673
    %1940 = vmatpush1.bf16.msra.mxu0 %v1672
    %1941 = vmatprep.subr.bf16.mxu0 %v1675
    %1942 = vmatpush1.bf16.msra.mxu0 %v1674
    %1943 = vmatprep.subr.bf16.mxu0 %v1677
    %1944 = vmatpush1.bf16.msra.mxu0 %v1676
    %1945 = vmatprep.subr.bf16.mxu0 %v1679
    %1946 = vmatpush1.bf16.msra.mxu0 %v1678
    %1947 = vmatprep.subr.bf16.mxu0 %v1681
    %1948 = vmatpush1.bf16.msra.mxu0 %v1680
    %1949 = vmatprep.subr.bf16.mxu0 %v1683
    %1950 = vmatpush1.bf16.msra.mxu0 %v1682
    %1951 = vmatprep.subr.bf16.mxu0 %v1685
    %1952 = vmatpush1.bf16.msra.mxu0 %v1684
    %1953 = vmatprep.subr.bf16.mxu0 %v1687
    %1954 = vmatpush1.bf16.msra.mxu0 %v1686
    %1955 = vmatprep.subr.bf16.mxu0 %v1689
    %1956 = vmatpush1.bf16.msra.mxu0 %v1688
    %1957 = vmatprep.subr.bf16.mxu0 %v1691
    %1958 = vmatpush1.bf16.msra.mxu0 %v1690
    %1959 = vmatprep.subr.bf16.mxu0 %v1693
    %1960 = vmatpush1.bf16.msra.mxu0 %v1692
    %1961 = vmatprep.subr.bf16.mxu0 %v1695
    %1962 = vmatpush1.bf16.msra.mxu0 %v1694
    %1963 = vmatprep.mubr.bf16.mxu0 %v1103
    %1964 = vmatmul.mubr.bf16.gmra.mrb[0].mxu0 %v1102
    %v1965 = vpop.f32.mrb[0].mxu0
    %v1966 = vadd.f32 %v1923, %v1965
    %v1967 = vpop.f32.mrb[0].mxu0
    %v1968 = vadd.f32 %v1925, %v1967
    %v1969 = vpop.f32.mrb[0].mxu0
    %v1970 = vadd.f32 %v1927, %v1969
    %v1971 = vpop.f32.mrb[0].mxu0
    %v1972 = vadd.f32 %v1929, %v1971
    %1973 = vdwg.mxu0
    %1974 = vmatprep.subr.bf16.mxu0 %v1697
    %1975 = vmatpush1.bf16.msra.mxu0 %v1696
    %1976 = vmatprep.subr.bf16.mxu0 %v1699
    %1977 = vmatpush1.bf16.msra.mxu0 %v1698
    %1978 = vmatprep.subr.bf16.mxu0 %v1701
    %1979 = vmatpush1.bf16.msra.mxu0 %v1700
    %1980 = vmatprep.subr.bf16.mxu0 %v1703
    %1981 = vmatpush1.bf16.msra.mxu0 %v1702
    %1982 = vmatprep.subr.bf16.mxu0 %v1705
    %1983 = vmatpush1.bf16.msra.mxu0 %v1704
    %1984 = vmatprep.subr.bf16.mxu0 %v1707
    %1985 = vmatpush1.bf16.msra.mxu0 %v1706
    %1986 = vmatprep.subr.bf16.mxu0 %v1709
    %1987 = vmatpush1.bf16.msra.mxu0 %v1708
    %1988 = vmatprep.subr.bf16.mxu0 %v1711
    %1989 = vmatpush1.bf16.msra.mxu0 %v1710
    %1990 = vmatprep.subr.bf16.mxu0 %v1713
    %1991 = vmatpush1.bf16.msra.mxu0 %v1712
    %1992 = vmatprep.subr.bf16.mxu0 %v1715
    %1993 = vmatpush1.bf16.msra.mxu0 %v1714
    %1994 = vmatprep.subr.bf16.mxu0 %v1717
    %1995 = vmatpush1.bf16.msra.mxu0 %v1716
    %1996 = vmatprep.subr.bf16.mxu0 %v1719
    %1997 = vmatpush1.bf16.msra.mxu0 %v1718
    %1998 = vmatprep.subr.bf16.mxu0 %v1721
    %1999 = vmatpush1.bf16.msra.mxu0 %v1720
    %2000 = vmatprep.subr.bf16.mxu0 %v1723
    %2001 = vmatpush1.bf16.msra.mxu0 %v1722
    %2002 = vmatprep.subr.bf16.mxu0 %v1725
    %2003 = vmatpush1.bf16.msra.mxu0 %v1724
    %2004 = vmatprep.subr.bf16.mxu0 %v1727
    %2005 = vmatpush1.bf16.msra.mxu0 %v1726
    %2006 = vmatprep.mubr.bf16.mxu0 %v1105
    %2007 = vmatmul.mubr.bf16.gmra.mrb[0].mxu0 %v1104
    %v2008 = vpop.f32.mrb[0].mxu0
    %v2009 = vadd.f32 %v1966, %v2008
    %v2010 = vpop.f32.mrb[0].mxu0
    %v2011 = vadd.f32 %v1968, %v2010
    %v2012 = vpop.f32.mrb[0].mxu0
    %v2013 = vadd.f32 %v1970, %v2012
    %v2014 = vpop.f32.mrb[0].mxu0
    %v2015 = vadd.f32 %v1972, %v2014
    %2016 = vdwg.mxu0
    %2017 = vmatprep.subr.bf16.mxu0 %v1729
    %2018 = vmatpush1.bf16.msra.mxu0 %v1728
    %2019 = vmatprep.subr.bf16.mxu0 %v1731
    %2020 = vmatpush1.bf16.msra.mxu0 %v1730
    %2021 = vmatprep.subr.bf16.mxu0 %v1733
    %2022 = vmatpush1.bf16.msra.mxu0 %v1732
    %2023 = vmatprep.subr.bf16.mxu0 %v1735
    %2024 = vmatpush1.bf16.msra.mxu0 %v1734
    %2025 = vmatprep.subr.bf16.mxu0 %v1737
    %2026 = vmatpush1.bf16.msra.mxu0 %v1736
    %2027 = vmatprep.subr.bf16.mxu0 %v1739
    %2028 = vmatpush1.bf16.msra.mxu0 %v1738
    %2029 = vmatprep.subr.bf16.mxu0 %v1741
    %2030 = vmatpush1.bf16.msra.mxu0 %v1740
    %2031 = vmatprep.subr.bf16.mxu0 %v1743
    %2032 = vmatpush1.bf16.msra.mxu0 %v1742
    %2033 = vmatprep.subr.bf16.mxu0 %v1745
    %2034 = vmatpush1.bf16.msra.mxu0 %v1744
    %2035 = vmatprep.subr.bf16.mxu0 %v1747
    %2036 = vmatpush1.bf16.msra.mxu0 %v1746
    %2037 = vmatprep.subr.bf16.mxu0 %v1749
    %2038 = vmatpush1.bf16.msra.mxu0 %v1748
    %2039 = vmatprep.subr.bf16.mxu0 %v1751
    %2040 = vmatpush1.bf16.msra.mxu0 %v1750
    %2041 = vmatprep.subr.bf16.mxu0 %v1753
    %2042 = vmatpush1.bf16.msra.mxu0 %v1752
    %2043 = vmatprep.subr.bf16.mxu0 %v1755
    %2044 = vmatpush1.bf16.msra.mxu0 %v1754
    %2045 = vmatprep.subr.bf16.mxu0 %v1757
    %2046 = vmatpush1.bf16.msra.mxu0 %v1756
    %2047 = vmatprep.subr.bf16.mxu0 %v1759
    %2048 = vmatpush1.bf16.msra.mxu0 %v1758
    %2049 = vmatprep.mubr.bf16.mxu0 %v1107
    %2050 = vmatmul.mubr.bf16.gmra.mrb[0].mxu0 %v1106
    %v2051 = vpop.f32.mrb[0].mxu0
    %v2052 = vadd.f32 %v2009, %v2051
    %v2053 = vpop.f32.mrb[0].mxu0
    %v2054 = vadd.f32 %v2011, %v2053
    %v2055 = vpop.f32.mrb[0].mxu0
    %v2056 = vadd.f32 %v2013, %v2055
    %v2057 = vpop.f32.mrb[0].mxu0
    %v2058 = vadd.f32 %v2015, %v2057
    %2059 = vdwg.mxu0
    %v2060 = vld [vmem:[#allocation10] sm:$0xff]
    %v2061 = vld [vmem:[#allocation10 + $0x8] sm:$0xff]
    %v2062 = vld [vmem:[#allocation10 + $0x10] sm:$0xff]
    %v2063 = vld [vmem:[#allocation10 + $0x18] sm:$0xff]
    %vm2064 = vcmp.lt.u32.totalorder %v2060, 3006477107
    %vm2065 = vcmp.lt.u32.totalorder %v2061, 3006477107
    %vm2066 = vcmp.lt.u32.totalorder %v2062, 3006477107
    %vm2067 = vcmp.lt.u32.totalorder %v2063, 3006477107
    %v2068 = vmul.f32 %v2052, 1.4285715
    %v2069 = vmul.f32 %v2054, 1.4285715
    %v2070 = vmul.f32 %v2056, 1.4285715
    %v2071 = vmul.f32 %v2058, 1.4285715
    %v2072 = vsel %vm2064, %v2068, 0.0
    %v2073 = vsel %vm2065, %v2069, 0.0
    %v2074 = vsel %vm2066, %v2070, 0.0
    %v2075 = vsel %vm2067, %v2071, 0.0
    %2076 = vst [vmem:[#allocation11] sm:$0xff] %v2072
    %2077 = vst [vmem:[#allocation11 + $0x8] sm:$0xff] %v2073
    %2078 = vst [vmem:[#allocation11 + $0x10] sm:$0xff] %v2074
    %2079 = vst [vmem:[#allocation11 + $0x18] sm:$0xff] %v2075
    // Predicated region
    $region46: #{tpu_custom_call.1} parent=1 // pred_check
      _
    $region47: #{tpu_custom_call.1} parent=1 // pred_check_branch
      %2081 = sbr.rel (0) target = $region49
    $region48: #{tpu_custom_call.1} parent=1 // pred_region
      %s2083 = ssub.s32 512, 512
      %2084 = vsyncadd [#allocation4], %s2083
      %s2085 = sshll.u32 [#allocation11], 4
      %s2086 = int_to_ptr.vmem [resolvable:$true] %s2085
      %2091 = dma.vmem_to_hbm [thread:$0]  %s2086, 512, %s6, [#allocation4], 256, 256, 16
    $region49: #{tpu_custom_call.1} parent=1 // pred_fallthru
      _
    // Predicated region
    $region50: #{tpu_custom_call.1} parent=1 // pred_check
      _
    $region51: #{tpu_custom_call.1} parent=1 // pred_check_branch
      %2093 = sbr.rel (0) target = $region53
    $region52: #{tpu_custom_call.1} parent=1 // pred_region
      %2094 = dma.done [#allocation4], 512
    $region53: #{tpu_custom_call.1} parent=1 // pred_fallthru
      _
    %2095 = vsyncpa [#allocation3], 1
    %2096 = vsyncpa [#allocation6], 1
    %2097 = vsyncpa [#allocation9], 1
    %2098 = vsyncpa [#allocation4], 1

</llo_original>
